<compile_context>
chip_gen: v5e
topology: v5e:2x2
jax: 0.10.0
libtpu: 0.0.40
codegen_flags: <defaults>
</compile_context>

<pallas_src>
import functools

import jax
import jax.numpy as jnp
from jax.experimental import pallas as pl
from jax.experimental.pallas import tpu as pltpu

LANE = 128


def _round_up(x, m):
    return (x + m - 1) // m * m


def _choose_band(m, cap=4096):
    """Row-band size: a multiple of 16 (bf16 sublane packing), capped at `cap`
    rows, and chosen so that the grid has >= 2 bands whenever m allows it (so
    the single 'parallel' axis shards across both v7x TensorCores).  The
    wrapper pads the row axis up to a multiple of the band, so any m works."""
    if m <= 32:
        return _round_up(m, 16)
    return min(cap, _round_up((m + 1) // 2, 16))


# ----------------------------- Pallas kernel --------------------------------

def _detect_kernel(p_ref, w1_ref, b1_ref, w2_ref, b2_ref, dec_ref, out_ref,
                   *, stride, tm, hw, w):
    """One grid step == one band of TM rows of the flattened (B*H*W) axis.

    p_ref  : (TM, Kc)  im2col patches (9*Cin zero-padded to Kc), bf16
    w1_ref : (Kc, Cp)  3x3 conv weights, bf16 (Chid zero-padded to Cp=128)
    b1_ref : (1, Cp)   f32 conv bias
    w2_ref : (Cp, Dn)  1x1 detect-head weights, bf16 (A*no zero-padded to Dn)
    b2_ref : (1, Dn)   f32 head bias
    dec_ref: (4, Dn)   decode constants: [x mask, y mask, wh mask, anchor w/h]
    out_ref: (TM, Dn)  decoded predictions (real data in cols < A*no)
    """
    # Fused im2col 3x3 conv: one K=Kc matmul on the MXU, f32 accumulation.
    hidden = jnp.dot(p_ref[...], w1_ref[...],
                     preferred_element_type=jnp.float32) + b1_ref[0:1, :]
    hidden = hidden * jax.nn.sigmoid(hidden)                     # SiLU

    # 1x1 detect head.
    raw = jnp.dot(hidden.astype(w2_ref.dtype), w2_ref[...],
                  preferred_element_type=jnp.float32) + b2_ref[0:1, :]
    y = jax.nn.sigmoid(raw)

    # Grid x/y generated in-kernel from the global flattened row index instead
    # of streaming an (M, 128) f32 grid table from HBM.  Float floor-division
    # with a +0.5 nudge is exact for B*H*W up to a few million rows.
    r0 = (pl.program_id(0) * tm).astype(jnp.float32)
    r = jax.lax.broadcasted_iota(jnp.int32, (tm, 1), 0).astype(jnp.float32) + r0
    b_idx = jnp.floor((r + 0.5) / hw)
    s = r - b_idx * hw                                           # r mod (H*W)
    gy = jnp.floor((s + 0.5) / w)
    gx = s - gy * w                                              # s mod W

    dec = dec_ref[...]
    mx, my = dec[0:1, :], dec[1:2, :]
    mwh, anc = dec[2:3, :], dec[3:4, :]

    # YOLOv5-style decode in the (TM, Dn) layout — no in-kernel reshape.
    ga_xy = gx * mx + gy * my                                    # grid x / y
    xy = (y * 2.0 - 0.5 + ga_xy) * stride
    wh = (y * 2.0) ** 2 * anc
    out = jnp.where((mx + my) != 0.0, xy, jnp.where(mwh != 0.0, wh, y))
    out_ref[...] = out.astype(out_ref.dtype)


# ------------------------------ shared prep -----------------------------------

def _prepare(x_nchw, params, *, no, mm_dtype=jnp.bfloat16):
    """im2col + zero-padding to MXU/lane-friendly shapes plus the per-column
    decode constants (plain XLA, outside the kernel)."""
    w1, b1, w2, b2, anchors = params
    B, Cin, H, W = x_nchw.shape
    Chid = w1.shape[2]
    a_no = w2.shape[1]                       # A * (5 + nc)
    A = a_no // no
    K = 9 * Cin

    # NCHW -> NHWC, spatial zero pad, im2col -> (B*H*W, 9*Cin).
    # TODO(synk): fusing this im2col into the kernel (halo'd NHWC row-band DMA)
    # would remove the materialized patches stream from HBM; left as follow-up.
    x = jnp.transpose(x_nchw, (0, 2, 3, 1)).astype(jnp.float32)
    xp = jnp.pad(x, ((0, 0), (1, 1), (1, 1), (0, 0)))
    taps = [xp[:, kh:kh + H, kw:kw + W, :]
            for kh in range(3) for kw in range(3)]
    patches = jnp.concatenate(taps, axis=-1).reshape(B * H * W, K)

    Kc = _round_up(K, 16)                    # contraction dim, bf16 pack
    Cp = _round_up(Chid, LANE)               # hidden width -> full lanes
    Dn = _round_up(a_no, 32)                 # head / decode / output width

    patches = jnp.pad(patches, ((0, 0), (0, Kc - K))).astype(mm_dtype)
    w1p = jnp.pad(w1.reshape(K, Chid),
                  ((0, Kc - K), (0, Cp - Chid))).astype(mm_dtype)
    b1p = jnp.pad(b1, ((0, 0), (0, Cp - Chid))).astype(jnp.float32)
    w2p = jnp.pad(w2, ((0, Cp - Chid), (0, Dn - a_no))).astype(mm_dtype)
    b2p = jnp.pad(b2, ((0, 0), (0, Dn - a_no))).astype(jnp.float32)

    # Per-column decode constants (tiny, precomputed): xy masks, wh mask,
    # per-anchor w/h packed into the matching columns.
    cols = jnp.arange(Dn)
    j = cols % no
    a_idx = jnp.minimum(cols // no, A - 1)
    valid = cols < a_no
    mx = ((j == 0) & valid).astype(jnp.float32)
    my = ((j == 1) & valid).astype(jnp.float32)
    mwh = ((j >= 2) & (j < 4) & valid).astype(jnp.float32)
    anc = jnp.where((j == 2) & valid, anchors[a_idx, 0],
                    jnp.where((j == 3) & valid, anchors[a_idx, 1], 0.0))
    dec = jnp.stack([mx, my, mwh, anc], axis=0).astype(jnp.float32)  # (4, Dn)

    meta = (B, H, W, a_no, Dn)
    return (patches, w1p, b1p, w2p, b2p, dec), meta


# ------------------------------ JAX wrapper ----------------------------------

def yolo_head_pallas(x_nchw, params, *, stride=1.0, no=8):
    """x_nchw: (B, 3, H, W) float32 (PyTorch NCHW convention)."""
    (patches, w1p, b1p, w2p, b2p, dec), meta = _prepare(x_nchw, params, no=no)
    B, H, W, a_no, Dn = meta
    M, Kc = patches.shape
    Cp = w1p.shape[1]

    TM = _choose_band(M)
    Mp = _round_up(M, TM)                    # pad rows -> any M is legal
    if Mp != M:
        patches = jnp.pad(patches, ((0, Mp - M), (0, 0)))
    grid = Mp // TM

    kernel = functools.partial(_detect_kernel, stride=float(stride), tm=TM,
                               hw=float(H * W), w=float(W))
    out = pl.pallas_call(
        kernel,
        out_shape=jax.ShapeDtypeStruct((Mp, Dn), jnp.float32),
        grid_spec=pltpu.PrefetchScalarGridSpec(
            num_scalar_prefetch=0,
            grid=(grid,),
            in_specs=[
                pl.BlockSpec((TM, Kc), lambda i: (i, 0)),    # im2col patches
                pl.BlockSpec((Kc, Cp), lambda i: (0, 0)),    # conv weights
                pl.BlockSpec((1, Cp), lambda i: (0, 0)),     # conv bias
                pl.BlockSpec((Cp, Dn), lambda i: (0, 0)),    # head weights
                pl.BlockSpec((1, Dn), lambda i: (0, 0)),     # head bias
                pl.BlockSpec((4, Dn), lambda i: (0, 0)),     # decode constants
            ],
            out_specs=pl.BlockSpec((TM, Dn), lambda i: (i, 0)),
        ),
        compiler_params=pltpu.CompilerParams(
            dimension_semantics=("parallel",),               # bands -> both TCs
            vmem_limit_bytes=32 * 1024 * 1024,
        ),
    )(patches, w1p, b1p, w2p, b2p, dec)

    # Strip row padding + lane padding and expose (B, H*W*A, no).  Row-major
    # (H*W, A*no) flattens to (H*W*A, no), so this is a cheap wrapper reshape.
    A = a_no // no
    out = out[:M].reshape(B, H * W, Dn)[:, :, :a_no]
    return out.reshape(B, H * W * A, no)


# ----------------------------- reference (JAX) --------------------------------

def yolo_head_ref(x_nchw, params, *, stride=1.0, no=8):
    (patches, w1p, b1p, w2p, b2p, dec), meta = _prepare(x_nchw, params, no=no)
    B, H, W, a_no, Dn = meta
    hidden = jnp.dot(patches, w1p, preferred_element_type=jnp.float32) + b1p[0]
    hidden = hidden * jax.nn.sigmoid(hidden)
    raw = jnp.dot(hidden.astype(w2p.dtype), w2p,
                  preferred_element_type=jnp.float32) + b2p[0]
    y = jax.nn.sigmoid(raw)

    r = jnp.arange(B * H * W, dtype=jnp.float32)[:, None]
    b_idx = jnp.floor((r + 0.5) / float(H * W))
    s = r - b_idx * float(H * W)
    gy = jnp.floor((s + 0.5) / float(W))
    gx = s - gy * float(W)

    mx, my, mwh, anc = dec[0:1], dec[1:2], dec[2:3], dec[3:4]
    ga_xy = gx * mx + gy * my
    xy = (y * 2.0 - 0.5 + ga_xy) * stride
    wh = (y * 2.0) ** 2 * anc
    out = jnp.where((mx + my) != 0.0, xy, jnp.where(mwh != 0.0, wh, y))
    A = a_no // no
    out = out.reshape(B, H * W, Dn)[:, :, :a_no]
    return out.reshape(B, H * W * A, no)


# ----------------------------------- main -------------------------------------

def make_params(key, *, Cin=3, Chid=32, A=3, nc=3):
    no = 5 + nc
    k1, k2, k3, k4 = jax.random.split(key, 4)
    w1 = jax.random.normal(k1, (9, Cin, Chid), jnp.float32) * 0.1
    b1 = jax.random.normal(k2, (1, Chid), jnp.float32) * 0.1
    w2 = jax.random.normal(k3, (Chid, A * no), jnp.float32) * 0.1
    b2 = jax.random.normal(k4, (1, A * no), jnp.float32) * 0.1
    anchors = jnp.array([[10.0, 13.0], [16.0, 30.0], [33.0, 23.0]],
                        jnp.float32)[:A]
    return (w1, b1, w2, b2, anchors)


if __name__ == "__main__":
    B, Cin, imgsz = 2, 3, 16
    A, nc = 3, 3
    no = 5 + nc
    key = jax.random.PRNGKey(0)
    kx, kp = jax.random.split(key)

    params = make_params(kp, Cin=Cin, A=A, nc=nc)
    x = jax.random.normal(kx, (B, Cin, imgsz, imgsz), jnp.float32)

    # warmup_forward equivalent: one pass on zeros(1, 3, imgsz, imgsz).
    warm = yolo_head_pallas(jnp.zeros((1, Cin, imgsz, imgsz), jnp.float32),
                            params, stride=1.0, no=no)
    jax.block_until_ready(warm)

    # real forward: pred = model(x)[0]
    pred = yolo_head_pallas(x, params, stride=1.0, no=no)
    jax.block_until_ready(pred)

    ref = yolo_head_ref(x, params, stride=1.0, no=no)
    assert pred.shape == (B, imgsz * imgsz * A, no), pred.shape
    assert jnp.allclose(pred, ref, rtol=1e-3, atol=1e-3), "mismatch vs reference"

    print("KERNEL_OK")
</pallas_src>

<mosaic_0001>
module attributes {stable_mosaic.version = 11 : i64} {
  func.func @_detect_kernel(%arg0: i32, %arg1: memref<128x32xbf16, #tpu.memory_space<vmem>>, %arg2: memref<32x128xbf16, #tpu.memory_space<vmem>>, %arg3: memref<1x128xf32, #tpu.memory_space<vmem>>, %arg4: memref<128x32xbf16, #tpu.memory_space<vmem>>, %arg5: memref<1x32xf32, #tpu.memory_space<vmem>>, %arg6: memref<4x32xf32, #tpu.memory_space<vmem>>, %arg7: memref<128x32xf32, #tpu.memory_space<vmem>>) attributes {dimension_semantics = [#tpu.dimension_semantics<parallel>], iteration_bounds = array<i64: 2>, scalar_prefetch = 0 : i64, scratch_operands = 0 : i64, tpu.core_type = #tpu.core_type<tc>, window_params = [{transform_indices = @transform_0, window_bounds = array<i64: 128, 32>}, {pipeline_mode = #tpu.pipeline_mode<synchronous>, transform_indices = @transform_1, window_bounds = array<i64: 32, 128>}, {pipeline_mode = #tpu.pipeline_mode<synchronous>, transform_indices = @transform_2, window_bounds = array<i64: 1, 128>}, {pipeline_mode = #tpu.pipeline_mode<synchronous>, transform_indices = @transform_3, window_bounds = array<i64: 128, 32>}, {pipeline_mode = #tpu.pipeline_mode<synchronous>, transform_indices = @transform_4, window_bounds = array<i64: 1, 32>}, {pipeline_mode = #tpu.pipeline_mode<synchronous>, transform_indices = @transform_5, window_bounds = array<i64: 4, 32>}, {transform_indices = @transform_6, window_bounds = array<i64: 128, 32>}]} {
    %c0 = arith.constant 0 : index
    %c0_0 = arith.constant 0 : index
    %0 = vector.load %arg1[%c0, %c0_0] : memref<128x32xbf16, #tpu.memory_space<vmem>>, vector<128x32xbf16>
    %c0_1 = arith.constant 0 : index
    %c0_2 = arith.constant 0 : index
    %1 = vector.load %arg2[%c0_1, %c0_2] : memref<32x128xbf16, #tpu.memory_space<vmem>>, vector<32x128xbf16>
    %cst = arith.constant dense<0.000000e+00> : vector<128x128xf32>
    %2 = tpu.matmul %0, %1, %cst {dimension_numbers = #tpu.dot_dimension_numbers<[1], [0], [0], [1], [0, 0, 1, 1], [], []>} : vector<128x32xbf16>, vector<32x128xbf16>, vector<128x128xf32> -> vector<128x128xf32>
    %c0_3 = arith.constant 0 : index
    %c0_4 = arith.constant 0 : index
    %3 = vector.load %arg3[%c0_3, %c0_4] : memref<1x128xf32, #tpu.memory_space<vmem>>, vector<1x128xf32>
    %4 = vector.broadcast %3 : vector<1x128xf32> to vector<128x128xf32>
    %5 = arith.addf %2, %4 : vector<128x128xf32>
    %6 = arith.negf %5 : vector<128x128xf32>
    %7 = math.exp %6 : vector<128x128xf32>
    %cst_5 = arith.constant 1.000000e+00 : f32
    %8 = vector.broadcast %cst_5 : f32 to vector<128x128xf32>
    %9 = arith.addf %8, %7 : vector<128x128xf32>
    %10 = arith.divf %8, %9 : vector<128x128xf32>
    %11 = arith.mulf %5, %10 : vector<128x128xf32>
    %12 = arith.truncf %11 : vector<128x128xf32> to vector<128x128xbf16>
    %c0_6 = arith.constant 0 : index
    %c0_7 = arith.constant 0 : index
    %13 = vector.load %arg4[%c0_6, %c0_7] : memref<128x32xbf16, #tpu.memory_space<vmem>>, vector<128x32xbf16>
    %cst_8 = arith.constant dense<0.000000e+00> : vector<128x32xf32>
    %14 = tpu.matmul %12, %13, %cst_8 {dimension_numbers = #tpu.dot_dimension_numbers<[1], [0], [0], [1], [0, 0, 1, 1], [], []>} : vector<128x128xbf16>, vector<128x32xbf16>, vector<128x32xf32> -> vector<128x32xf32>
    %c0_9 = arith.constant 0 : index
    %c0_10 = arith.constant 0 : index
    %15 = vector.load %arg5[%c0_9, %c0_10] : memref<1x32xf32, #tpu.memory_space<vmem>>, vector<1x32xf32>
    %16 = vector.broadcast %15 : vector<1x32xf32> to vector<128x32xf32>
    %17 = arith.addf %14, %16 : vector<128x32xf32>
    %18 = arith.negf %17 : vector<128x32xf32>
    %19 = math.exp %18 : vector<128x32xf32>
    %cst_11 = arith.constant 1.000000e+00 : f32
    %20 = vector.broadcast %cst_11 : f32 to vector<128x32xf32>
    %21 = arith.addf %20, %19 : vector<128x32xf32>
    %22 = arith.divf %20, %21 : vector<128x32xf32>
    %c128_i32 = arith.constant 128 : i32
    %23 = arith.muli %arg0, %c128_i32 : i32
    %24 = arith.sitofp %23 : i32 to f32
    %25 = tpu.iota {dimensions = array<i32: 0>} : vector<128x1xi32>
    %26 = arith.sitofp %25 : vector<128x1xi32> to vector<128x1xf32>
    %27 = vector.broadcast %24 : f32 to vector<128x1xf32>
    %28 = arith.addf %26, %27 : vector<128x1xf32>
    %cst_12 = arith.constant 5.000000e-01 : f32
    %29 = vector.broadcast %cst_12 : f32 to vector<128x1xf32>
    %30 = arith.addf %28, %29 : vector<128x1xf32>
    %cst_13 = arith.constant 2.560000e+02 : f32
    %31 = vector.broadcast %cst_13 : f32 to vector<128x1xf32>
    %32 = arith.divf %30, %31 : vector<128x1xf32>
    %33 = math.floor %32 : vector<128x1xf32>
    %cst_14 = arith.constant 2.560000e+02 : f32
    %34 = vector.broadcast %cst_14 : f32 to vector<128x1xf32>
    %35 = arith.mulf %33, %34 : vector<128x1xf32>
    %36 = arith.subf %28, %35 : vector<128x1xf32>
    %cst_15 = arith.constant 5.000000e-01 : f32
    %37 = vector.broadcast %cst_15 : f32 to vector<128x1xf32>
    %38 = arith.addf %36, %37 : vector<128x1xf32>
    %cst_16 = arith.constant 1.600000e+01 : f32
    %39 = vector.broadcast %cst_16 : f32 to vector<128x1xf32>
    %40 = arith.divf %38, %39 : vector<128x1xf32>
    %41 = math.floor %40 : vector<128x1xf32>
    %cst_17 = arith.constant 1.600000e+01 : f32
    %42 = vector.broadcast %cst_17 : f32 to vector<128x1xf32>
    %43 = arith.mulf %41, %42 : vector<128x1xf32>
    %44 = arith.subf %36, %43 : vector<128x1xf32>
    %c0_18 = arith.constant 0 : index
    %c0_19 = arith.constant 0 : index
    %45 = vector.load %arg6[%c0_18, %c0_19] : memref<4x32xf32, #tpu.memory_space<vmem>>, vector<4x32xf32>
    %46 = vector.extract_strided_slice %45 {offsets = [0, 0], sizes = [1, 32], strides = [1, 1]} : vector<4x32xf32> to vector<1x32xf32>
    %47 = vector.extract_strided_slice %45 {offsets = [1, 0], sizes = [1, 32], strides = [1, 1]} : vector<4x32xf32> to vector<1x32xf32>
    %48 = vector.extract_strided_slice %45 {offsets = [2, 0], sizes = [1, 32], strides = [1, 1]} : vector<4x32xf32> to vector<1x32xf32>
    %49 = vector.extract_strided_slice %45 {offsets = [3, 0], sizes = [1, 32], strides = [1, 1]} : vector<4x32xf32> to vector<1x32xf32>
    %50 = vector.broadcast %44 : vector<128x1xf32> to vector<128x32xf32>
    %51 = vector.broadcast %46 : vector<1x32xf32> to vector<128x32xf32>
    %52 = arith.mulf %50, %51 : vector<128x32xf32>
    %53 = vector.broadcast %41 : vector<128x1xf32> to vector<128x32xf32>
    %54 = vector.broadcast %47 : vector<1x32xf32> to vector<128x32xf32>
    %55 = arith.mulf %53, %54 : vector<128x32xf32>
    %56 = arith.addf %52, %55 : vector<128x32xf32>
    %cst_20 = arith.constant 2.000000e+00 : f32
    %57 = vector.broadcast %cst_20 : f32 to vector<128x32xf32>
    %58 = arith.mulf %22, %57 : vector<128x32xf32>
    %cst_21 = arith.constant 5.000000e-01 : f32
    %59 = vector.broadcast %cst_21 : f32 to vector<128x32xf32>
    %60 = arith.subf %58, %59 : vector<128x32xf32>
    %61 = arith.addf %60, %56 : vector<128x32xf32>
    %cst_22 = arith.constant 1.000000e+00 : f32
    %62 = vector.broadcast %cst_22 : f32 to vector<128x32xf32>
    %63 = arith.mulf %61, %62 : vector<128x32xf32>
    %cst_23 = arith.constant 2.000000e+00 : f32
    %64 = vector.broadcast %cst_23 : f32 to vector<128x32xf32>
    %65 = arith.mulf %22, %64 : vector<128x32xf32>
    %66 = arith.mulf %65, %65 : vector<128x32xf32>
    %67 = vector.broadcast %49 : vector<1x32xf32> to vector<128x32xf32>
    %68 = arith.mulf %66, %67 : vector<128x32xf32>
    %69 = arith.addf %46, %47 : vector<1x32xf32>
    %cst_24 = arith.constant 0.000000e+00 : f32
    %70 = vector.broadcast %cst_24 : f32 to vector<1x32xf32>
    %71 = arith.cmpf one, %69, %70 : vector<1x32xf32>
    %cst_25 = arith.constant 0.000000e+00 : f32
    %72 = vector.broadcast %cst_25 : f32 to vector<1x32xf32>
    %73 = arith.cmpf one, %48, %72 : vector<1x32xf32>
    %74 = vector.shape_cast %73 : vector<1x32xi1> to vector<1x32xi1>
    %75 = vector.broadcast %74 : vector<1x32xi1> to vector<128x32xi1>
    %76 = arith.select %75, %68, %22 : vector<128x32xi1>, vector<128x32xf32>
    %77 = vector.shape_cast %71 : vector<1x32xi1> to vector<1x32xi1>
    %78 = vector.broadcast %77 : vector<1x32xi1> to vector<128x32xi1>
    %79 = arith.select %78, %63, %76 : vector<128x32xi1>, vector<128x32xf32>
    %c0_26 = arith.constant 0 : index
    %c0_27 = arith.constant 0 : index
    %80 = vector.load %arg7[%c0_26, %c0_27] : memref<128x32xf32, #tpu.memory_space<vmem>>, vector<128x32xf32>
    tpu.vector_store %arg7[%c0_26, %c0_27], %79 {strides = array<i32>} : memref<128x32xf32, #tpu.memory_space<vmem>>, vector<128x32xf32>,
    return
  }
  func.func @transform_0(%arg0: i32) -> (i32, i32) {
    %c0_i32 = arith.constant 0 : i32
    %c0_i32_0 = arith.constant 0 : i32
    return %arg0, %c0_i32 : i32, i32
  }
  func.func @transform_1(%arg0: i32) -> (i32, i32) {
    %c0_i32 = arith.constant 0 : i32
    %c0_i32_0 = arith.constant 0 : i32
    %c0_i32_1 = arith.constant 0 : i32
    return %c0_i32, %c0_i32_0 : i32, i32
  }
  func.func @transform_2(%arg0: i32) -> (i32, i32) {
    %c0_i32 = arith.constant 0 : i32
    %c0_i32_0 = arith.constant 0 : i32
    %c0_i32_1 = arith.constant 0 : i32
    return %c0_i32, %c0_i32_0 : i32, i32
  }
  func.func @transform_3(%arg0: i32) -> (i32, i32) {
    %c0_i32 = arith.constant 0 : i32
    %c0_i32_0 = arith.constant 0 : i32
    %c0_i32_1 = arith.constant 0 : i32
    return %c0_i32, %c0_i32_0 : i32, i32
  }
  func.func @transform_4(%arg0: i32) -> (i32, i32) {
    %c0_i32 = arith.constant 0 : i32
    %c0_i32_0 = arith.constant 0 : i32
    %c0_i32_1 = arith.constant 0 : i32
    return %c0_i32, %c0_i32_0 : i32, i32
  }
  func.func @transform_5(%arg0: i32) -> (i32, i32) {
    %c0_i32 = arith.constant 0 : i32
    %c0_i32_0 = arith.constant 0 : i32
    %c0_i32_1 = arith.constant 0 : i32
    return %c0_i32, %c0_i32_0 : i32, i32
  }
  func.func @transform_6(%arg0: i32) -> (i32, i32) {
    %c0_i32 = arith.constant 0 : i32
    %c0_i32_0 = arith.constant 0 : i32
    return %arg0, %c0_i32 : i32, i32
  }
}

</mosaic_0001>

<llo_original>
// kernel: tpu_custom_call.1
$region0: #{tpu_custom_call.1}
  #allocation0 [shape = 'u32[]', space=smem, size = 0x4, offset = 0x4, fixed_abs, tag = 'smem constant byte address 0x4 - core index']
  #allocation1 [shape = 'u32[72,128]{1,0:T(1,128)}', space=vmem, size = 0x9000, scoped, tag = 'internal scratch']
  %s0 = inlined_call_operand.vmem [shape: bf16[256,32], index: 0, kind: input, shape index: {}]
  %s1 = inlined_call_operand.vmem [shape: bf16[32,128], index: 1, kind: input, shape index: {}]
  %s2 = inlined_call_operand.vmem [shape: f32[1,128], index: 2, kind: input, shape index: {}]
  %s3 = inlined_call_operand.vmem [shape: bf16[128,32], index: 3, kind: input, shape index: {}]
  %s4 = inlined_call_operand.vmem [shape: f32[1,32], index: 4, kind: input, shape index: {}]
  %s5 = inlined_call_operand.vmem [shape: f32[4,32], index: 5, kind: input, shape index: {}]
  %s6 = inlined_call_operand.vmem [shape: f32[256,32], index: 6, kind: output, shape index: {}]
  %s7 = sld [smem:[#allocation0]]
  $region57: #{tpu_custom_call.1} parent=0
    _
  %s9 = ssub.s32 1, %s7
  %s10 = scalar_select 0, %s9, %s7
  loop: start=0, step=1, limit=4
  $region2: #{tpu_custom_call.1} parent=0 // loop_pre_header
    _
  $region3: #{tpu_custom_call.1} parent=0 // loop_header
    %s12 = sphi 0, %s16
    %p13 = scmp.ge.s32.totalorder %s12, 4
    %s22 = sphi 0, %s24
    %s25 = sphi 0, %s22
    %s26 = sphi 0, %s25
    %s42 = sphi 0, %s26
    %s46 = sphi 0, %s46
    %s48 = sphi 0, %s46
    %s49 = sphi 0, %s48
    %s63 = sphi 0, %s49
    %s67 = sphi 0, %s67
    %s69 = sphi 0, %s67
    %s70 = sphi 0, %s69
    %s84 = sphi 0, %s70
    %s88 = sphi 0, %s88
    %s90 = sphi 0, %s88
    %s91 = sphi 0, %s90
    %s105 = sphi 0, %s91
    %s109 = sphi 0, %s109
    %s111 = sphi 0, %s109
    %s112 = sphi 0, %s111
    %s126 = sphi 0, %s112
    %s130 = sphi 0, %s130
    %s132 = sphi 0, %s130
    %s133 = sphi 0, %s132
    %s147 = sphi 0, %s133
    %s153 = sphi 0, %s155
    %s156 = sphi 0, %s153
    %s157 = sphi 0, %s156
    %s173 = sphi 0, %s157
  $region4: #{tpu_custom_call.1} parent=0 // loop_header_branch
    %15 = sbr.rel (%p13) target = $region8
  $region5: #{tpu_custom_call.1} parent=0 // loop_body
    %s17 = ssub.s32 %s12, 1
    %s18 = ssub.s32 %s12, 2
    %s19 = sadd.s32 %s12, 1
    %s20 = ssub.s32 %s12, %s19
    %p21 = scmp.eq.s32.totalorder %s20, 0
    %s23 = sadd.s32 %s22, 1
    %s24 = scalar_select %p21, %s22, %s23
    %p27 = pneg %p21
    %p28 = scmp.eq.s32.totalorder %s12, 1
    %p29 = por %p27, %p28
    %p30 = scmp.ne.s32.totalorder %s22, %s25
    %p31 = scmp.eq.s32.totalorder %s12, 0
    %p32 = por %p30, %p31
    %p33 = scmp.ne.s32.totalorder %s22, %s25
    %p34 = scmp.eq.s32.totalorder %s17, 1
    %p35 = por %p33, %p34
    %p36 = scmp.ne.s32.totalorder %s25, %s26
    %p37 = scmp.eq.s32.totalorder %s17, 0
    %p38 = por %p36, %p37
    %p39 = scmp.ne.s32.totalorder %s25, %s26
    %p40 = scmp.eq.s32.totalorder %s18, 1
    %p41 = por %p39, %p40
    %p43 = scmp.ne.s32.totalorder %s26, %s42
    %p44 = scmp.eq.s32.totalorder %s18, 0
    %p45 = por %p43, %p44
    %s47 = sadd.s32 %s46, 1
    %p50 = scmp.eq.s32.totalorder %s12, 1
    %p51 = scmp.ne.s32.totalorder %s46, %s48
    %p52 = scmp.eq.s32.totalorder %s12, 0
    %p53 = por %p51, %p52
    %p54 = scmp.ne.s32.totalorder %s46, %s48
    %p55 = scmp.eq.s32.totalorder %s17, 1
    %p56 = por %p54, %p55
    %p57 = scmp.ne.s32.totalorder %s48, %s49
    %p58 = scmp.eq.s32.totalorder %s17, 0
    %p59 = por %p57, %p58
    %p60 = scmp.ne.s32.totalorder %s48, %s49
    %p61 = scmp.eq.s32.totalorder %s18, 1
    %p62 = por %p60, %p61
    %p64 = scmp.ne.s32.totalorder %s49, %s63
    %p65 = scmp.eq.s32.totalorder %s18, 0
    %p66 = por %p64, %p65
    %s68 = sadd.s32 %s67, 1
    %p71 = scmp.eq.s32.totalorder %s12, 1
    %p72 = scmp.ne.s32.totalorder %s67, %s69
    %p73 = scmp.eq.s32.totalorder %s12, 0
    %p74 = por %p72, %p73
    %p75 = scmp.ne.s32.totalorder %s67, %s69
    %p76 = scmp.eq.s32.totalorder %s17, 1
    %p77 = por %p75, %p76
    %p78 = scmp.ne.s32.totalorder %s69, %s70
    %p79 = scmp.eq.s32.totalorder %s17, 0
    %p80 = por %p78, %p79
    %p81 = scmp.ne.s32.totalorder %s69, %s70
    %p82 = scmp.eq.s32.totalorder %s18, 1
    %p83 = por %p81, %p82
    %p85 = scmp.ne.s32.totalorder %s70, %s84
    %p86 = scmp.eq.s32.totalorder %s18, 0
    %p87 = por %p85, %p86
    %s89 = sadd.s32 %s88, 1
    %p92 = scmp.eq.s32.totalorder %s12, 1
    %p93 = scmp.ne.s32.totalorder %s88, %s90
    %p94 = scmp.eq.s32.totalorder %s12, 0
    %p95 = por %p93, %p94
    %p96 = scmp.ne.s32.totalorder %s88, %s90
    %p97 = scmp.eq.s32.totalorder %s17, 1
    %p98 = por %p96, %p97
    %p99 = scmp.ne.s32.totalorder %s90, %s91
    %p100 = scmp.eq.s32.totalorder %s17, 0
    %p101 = por %p99, %p100
    %p102 = scmp.ne.s32.totalorder %s90, %s91
    %p103 = scmp.eq.s32.totalorder %s18, 1
    %p104 = por %p102, %p103
    %p106 = scmp.ne.s32.totalorder %s91, %s105
    %p107 = scmp.eq.s32.totalorder %s18, 0
    %p108 = por %p106, %p107
    %s110 = sadd.s32 %s109, 1
    %p113 = scmp.eq.s32.totalorder %s12, 1
    %p114 = scmp.ne.s32.totalorder %s109, %s111
    %p115 = scmp.eq.s32.totalorder %s12, 0
    %p116 = por %p114, %p115
    %p117 = scmp.ne.s32.totalorder %s109, %s111
    %p118 = scmp.eq.s32.totalorder %s17, 1
    %p119 = por %p117, %p118
    %p120 = scmp.ne.s32.totalorder %s111, %s112
    %p121 = scmp.eq.s32.totalorder %s17, 0
    %p122 = por %p120, %p121
    %p123 = scmp.ne.s32.totalorder %s111, %s112
    %p124 = scmp.eq.s32.totalorder %s18, 1
    %p125 = por %p123, %p124
    %p127 = scmp.ne.s32.totalorder %s112, %s126
    %p128 = scmp.eq.s32.totalorder %s18, 0
    %p129 = por %p127, %p128
    %s131 = sadd.s32 %s130, 1
    %p134 = scmp.eq.s32.totalorder %s12, 1
    %p135 = scmp.ne.s32.totalorder %s130, %s132
    %p136 = scmp.eq.s32.totalorder %s12, 0
    %p137 = por %p135, %p136
    %p138 = scmp.ne.s32.totalorder %s130, %s132
    %p139 = scmp.eq.s32.totalorder %s17, 1
    %p140 = por %p138, %p139
    %p141 = scmp.ne.s32.totalorder %s132, %s133
    %p142 = scmp.eq.s32.totalorder %s17, 0
    %p143 = por %p141, %p142
    %p144 = scmp.ne.s32.totalorder %s132, %s133
    %p145 = scmp.eq.s32.totalorder %s18, 1
    %p146 = por %p144, %p145
    %p148 = scmp.ne.s32.totalorder %s133, %s147
    %p149 = scmp.eq.s32.totalorder %s18, 0
    %p150 = por %p148, %p149
    %s151 = ssub.s32 %s12, %s19
    %p152 = scmp.eq.s32.totalorder %s151, 0
    %s154 = sadd.s32 %s153, 1
    %s155 = scalar_select %p152, %s153, %s154
    %p158 = pneg %p152
    %p159 = scmp.eq.s32.totalorder %s12, 1
    %p160 = por %p158, %p159
    %p161 = scmp.ne.s32.totalorder %s153, %s156
    %p162 = scmp.eq.s32.totalorder %s12, 0
    %p163 = por %p161, %p162
    %p164 = scmp.ne.s32.totalorder %s153, %s156
    %p165 = scmp.eq.s32.totalorder %s17, 1
    %p166 = por %p164, %p165
    %p167 = scmp.ne.s32.totalorder %s156, %s157
    %p168 = scmp.eq.s32.totalorder %s17, 0
    %p169 = por %p167, %p168
    %p170 = scmp.ne.s32.totalorder %s156, %s157
    %p171 = scmp.eq.s32.totalorder %s18, 1
    %p172 = por %p170, %p171
    %p174 = scmp.ne.s32.totalorder %s157, %s173
    %p175 = scmp.eq.s32.totalorder %s18, 0
    %p176 = por %p174, %p175
    %p177 = scmp.le.s32.totalorder 1, %s12
    %p178 = scmp.lt.s32.totalorder %s12, 3
    %p179 = pnand %p177, %p178
    %p180 = pneg %p179
    // Predicated region
    $region9: #{tpu_custom_call.1} parent=5 // pred_check
      _
    $region10: #{tpu_custom_call.1} parent=5 // pred_check_branch
      %182 = sbr.rel (%p179) target = $region12
    $region11: #{tpu_custom_call.1} parent=5 // pred_region
      %s183 = ssub.s32 %s12, 1
      // Predicated region
      $region13: #{tpu_custom_call.1} parent=11 // pred_check
        %p184 = pneg %p59
      $region14: #{tpu_custom_call.1} parent=11 // pred_check_branch
        %186 = sbr.rel (%p184) target = $region16
      $region15: #{tpu_custom_call.1} parent=11 // pred_region
        _
      $region16: #{tpu_custom_call.1} parent=11 // pred_fallthru
        _
      // Predicated region
      $region17: #{tpu_custom_call.1} parent=11 // pred_check
        %p187 = pneg %p80
      $region18: #{tpu_custom_call.1} parent=11 // pred_check_branch
        %189 = sbr.rel (%p187) target = $region20
      $region19: #{tpu_custom_call.1} parent=11 // pred_region
        _
      $region20: #{tpu_custom_call.1} parent=11 // pred_fallthru
        _
      // Predicated region
      $region21: #{tpu_custom_call.1} parent=11 // pred_check
        %p190 = pneg %p101
      $region22: #{tpu_custom_call.1} parent=11 // pred_check_branch
        %192 = sbr.rel (%p190) target = $region24
      $region23: #{tpu_custom_call.1} parent=11 // pred_region
        _
      $region24: #{tpu_custom_call.1} parent=11 // pred_fallthru
        _
      // Predicated region
      $region25: #{tpu_custom_call.1} parent=11 // pred_check
        %p193 = pneg %p122
      $region26: #{tpu_custom_call.1} parent=11 // pred_check_branch
        %195 = sbr.rel (%p193) target = $region28
      $region27: #{tpu_custom_call.1} parent=11 // pred_region
        _
      $region28: #{tpu_custom_call.1} parent=11 // pred_fallthru
        _
      // Predicated region
      $region29: #{tpu_custom_call.1} parent=11 // pred_check
        %p196 = pneg %p143
      $region30: #{tpu_custom_call.1} parent=11 // pred_check_branch
        %198 = sbr.rel (%p196) target = $region32
      $region31: #{tpu_custom_call.1} parent=11 // pred_region
        _
      $region32: #{tpu_custom_call.1} parent=11 // pred_fallthru
        _
    $region12: #{tpu_custom_call.1} parent=5 // pred_fallthru
      _
    %p199 = scmp.lt.s32.totalorder %s12, 2
    // Predicated region
    $region33: #{tpu_custom_call.1} parent=5 // pred_check
      %p200 = pneg %p199
    $region34: #{tpu_custom_call.1} parent=5 // pred_check_branch
      %202 = sbr.rel (%p200) target = $region36
    $region35: #{tpu_custom_call.1} parent=5 // pred_region
      // Predicated region
      $region37: #{tpu_custom_call.1} parent=35 // pred_check
        %p203 = pneg %p32
      $region38: #{tpu_custom_call.1} parent=35 // pred_check_branch
        %205 = sbr.rel (%p203) target = $region40
      $region39: #{tpu_custom_call.1} parent=35 // pred_region
        %s206 = smul.u32 16, %s12
        %p207 = scmp.lt.s32.totalorder %s206, 31
        %s208 = scalar_select %p207, %s206, 31
        %s209 = smul.addr %s208, 4
        %s210 = scalar_lea.vmem %s0, %s209
        %s211 = smul.u32 16, %s12
      $region40: #{tpu_custom_call.1} parent=35 // pred_fallthru
        _
    $region36: #{tpu_custom_call.1} parent=5 // pred_fallthru
      _
    %p212 = scmp.le.s32.totalorder 1, %s12
    %p213 = scmp.lt.s32.totalorder %s12, 3
    %p214 = pnand %p212, %p213
    %p215 = pneg %p214
    // Predicated region
    $region41: #{tpu_custom_call.1} parent=5 // pred_check
      _
    $region42: #{tpu_custom_call.1} parent=5 // pred_check_branch
      %217 = sbr.rel (%p214) target = $region44
    $region43: #{tpu_custom_call.1} parent=5 // pred_region
      %s218 = ssub.s32 %s12, 1
      %s219 = smul.u32 16, %s17
      %p220 = scmp.lt.s32.totalorder %s219, 31
      %s221 = scalar_select %p220, %s219, 31
      %s222 = smul.addr %s221, 4
      %s223 = scalar_lea.vmem %s0, %s222
      %p224 = pneg %p38
      %p225 = pneg %p35
      %p226 = pneg %p59
      %p227 = pneg %p56
      %p228 = pneg %p80
      %p229 = pneg %p77
      %p230 = pneg %p101
      %p231 = pneg %p98
      %p232 = pneg %p122
      %p233 = pneg %p119
      %p234 = pneg %p143
      %p235 = pneg %p140
      %p236 = pneg %p169
      %p237 = pneg %p166
      %s238 = smul.u32 16, %s17
      %p239 = scmp.lt.s32.totalorder %s238, 31
      %s240 = scalar_select %p239, %s238, 31
      %s241 = smul.addr %s240, 8
      %s242 = scalar_lea.vmem %s6, %s241
      %s243 = smul.u32 16, %s17
      %p244 = scmp.lt.s32.totalorder %s243, 31
      %s245 = scalar_select %p244, %s243, 31
      %s246 = smul.addr %s245, 4
      %s247 = scalar_lea.vmem %s0, %s246
      %s248 = smul.u32 16, %s17
      %s249 = smul.u32 16, %s17
      %p250 = scmp.lt.s32.totalorder %s249, 31
      %s251 = scalar_select %p250, %s249, 31
      %s252 = smul.addr %s251, 8
      %s253 = scalar_lea.vmem %s6, %s252
      %s254 = smul.u32 16, %s17
      %v256 = vld [vmem:[%s247] sm:$0xf]
      %v257 = vld [vmem:[%s247 + $0x4] sm:$0xf]
      %v258 = vld [vmem:[%s247 + $0x8] sm:$0xf]
      %v259 = vld [vmem:[%s247 + $0xc] sm:$0xf]
      %v260 = vld [vmem:[%s247 + $0x10] sm:$0xf]
      %v261 = vld [vmem:[%s247 + $0x14] sm:$0xf]
      %v262 = vld [vmem:[%s247 + $0x18] sm:$0xf]
      %v263 = vld [vmem:[%s247 + $0x1c] sm:$0xf]
      %v264 = vld [vmem:[%s247 + $0x20] sm:$0xf]
      %v265 = vld [vmem:[%s247 + $0x24] sm:$0xf]
      %v266 = vld [vmem:[%s247 + $0x28] sm:$0xf]
      %v267 = vld [vmem:[%s247 + $0x2c] sm:$0xf]
      %v268 = vld [vmem:[%s247 + $0x30] sm:$0xf]
      %v269 = vld [vmem:[%s247 + $0x34] sm:$0xf]
      %v270 = vld [vmem:[%s247 + $0x38] sm:$0xf]
      %v271 = vld [vmem:[%s247 + $0x3c] sm:$0xf]
      %v272 = vld [vmem:[%s1] sm:$0xf]
      %v273 = vld [vmem:[%s1 + $0x4] sm:$0xf]
      %v274 = vld [vmem:[%s1 + $0x8] sm:$0xf]
      %v275 = vld [vmem:[%s1 + $0xc] sm:$0xf]
      %v276 = vld [vmem:[%s2] sm:$0x1]
      %v278 = vperm.slane %v276, 0
      %v296 = vunpack.c.l.b16 %v256
      %v297 = vunpack.c.l.b16 %v257
      %v298 = vunpack.c.l.b16 %v258
      %v299 = vunpack.c.l.b16 %v259
      %v300 = vunpack.c.l.b16 %v260
      %v301 = vunpack.c.l.b16 %v261
      %v302 = vunpack.c.l.b16 %v262
      %v303 = vunpack.c.l.b16 %v263
      %v304 = vunpack.c.l.b16 %v264
      %v305 = vunpack.c.l.b16 %v265
      %v306 = vunpack.c.l.b16 %v266
      %v307 = vunpack.c.l.b16 %v267
      %v308 = vunpack.c.l.b16 %v268
      %v309 = vunpack.c.l.b16 %v269
      %v310 = vunpack.c.l.b16 %v270
      %v311 = vunpack.c.l.b16 %v271
      %v312 = vpack.c.b16 %v297, %v296
      %v313 = vpack.c.b16 %v299, %v298
      %v314 = vpack.c.b16 %v301, %v300
      %v315 = vpack.c.b16 %v303, %v302
      %v316 = vpack.c.b16 %v305, %v304
      %v317 = vpack.c.b16 %v307, %v306
      %v318 = vpack.c.b16 %v309, %v308
      %v319 = vpack.c.b16 %v311, %v310
      %v324 = vunpack.c.l.b16 %v272
      %v325 = vunpack.c.l.b16 %v273
      %v326 = vunpack.c.l.b16 %v274
      %v327 = vunpack.c.l.b16 %v275
      %v328 = vpack.c.b16 %v325, %v324
      %v329 = vpack.c.b16 %v327, %v326
      %vm332 = vcmask 261120
      %v334 = vsel %vm332, %v312, 0
      %v337 = vsel %vm332, %v313, 0
      %v340 = vsel %vm332, %v314, 0
      %v343 = vsel %vm332, %v315, 0
      %v346 = vsel %vm332, %v316, 0
      %v349 = vsel %vm332, %v317, 0
      %v352 = vsel %vm332, %v318, 0
      %v355 = vsel %vm332, %v319, 0
      %357 = vmatpush.bf16.msra.mxu0 0
      %358 = vmatpush.bf16.msra.mxu0 0
      %359 = vmatpush.bf16.msra.mxu0 0
      %360 = vmatpush.bf16.msra.mxu0 0
      %361 = vmatpush.bf16.msra.mxu0 0
      %362 = vmatpush.bf16.msra.mxu0 0
      %363 = vmatpush.bf16.msra.mxu0 %v329
      %364 = vmatpush.bf16.msra.mxu0 %v328
      %365 = vmatmul.bf16.gmra.mxu0 %v334
      %v366 = vpop.f32.mrf.mxu0
      %v367 = vadd.f32 %v278, %v366
      %v368 = vpop.f32.mrf.mxu0
      %v369 = vadd.f32 %v278, %v368
      %370 = vmatmul.bf16.gmra.mxu0 %v337
      %v371 = vpop.f32.mrf.mxu0
      %v372 = vadd.f32 %v278, %v371
      %v373 = vpop.f32.mrf.mxu0
      %v374 = vadd.f32 %v278, %v373
      %375 = vmatmul.bf16.gmra.mxu0 %v340
      %v376 = vpop.f32.mrf.mxu0
      %v377 = vadd.f32 %v278, %v376
      %v378 = vpop.f32.mrf.mxu0
      %v379 = vadd.f32 %v278, %v378
      %380 = vmatmul.bf16.gmra.mxu0 %v343
      %v381 = vpop.f32.mrf.mxu0
      %v382 = vadd.f32 %v278, %v381
      %v383 = vpop.f32.mrf.mxu0
      %v384 = vadd.f32 %v278, %v383
      %385 = vmatmul.bf16.gmra.mxu0 %v346
      %v386 = vpop.f32.mrf.mxu0
      %v387 = vadd.f32 %v278, %v386
      %v388 = vpop.f32.mrf.mxu0
      %v389 = vadd.f32 %v278, %v388
      %390 = vmatmul.bf16.gmra.mxu0 %v349
      %v391 = vpop.f32.mrf.mxu0
      %v392 = vadd.f32 %v278, %v391
      %v393 = vpop.f32.mrf.mxu0
      %v394 = vadd.f32 %v278, %v393
      %395 = vmatmul.bf16.gmra.mxu0 %v352
      %v396 = vpop.f32.mrf.mxu0
      %v397 = vadd.f32 %v278, %v396
      %v398 = vpop.f32.mrf.mxu0
      %v399 = vadd.f32 %v278, %v398
      %400 = vmatmul.bf16.gmra.mxu0 %v355
      %v401 = vpop.f32.mrf.mxu0
      %v402 = vadd.f32 %v278, %v401
      %v403 = vpop.f32.mrf.mxu0
      %v404 = vadd.f32 %v278, %v403
      %405 = vdwg.mxu0
      %v406 = vxor.u32 %v367, 2147483648
      %v407 = vxor.u32 %v369, 2147483648
      %v408 = vxor.u32 %v372, 2147483648
      %v409 = vxor.u32 %v374, 2147483648
      %v410 = vxor.u32 %v377, 2147483648
      %v411 = vxor.u32 %v379, 2147483648
      %v412 = vxor.u32 %v382, 2147483648
      %v413 = vxor.u32 %v384, 2147483648
      %v414 = vxor.u32 %v387, 2147483648
      %v415 = vxor.u32 %v389, 2147483648
      %v416 = vxor.u32 %v392, 2147483648
      %v417 = vxor.u32 %v394, 2147483648
      %v418 = vxor.u32 %v397, 2147483648
      %v419 = vxor.u32 %v399, 2147483648
      %v420 = vxor.u32 %v402, 2147483648
      %v421 = vxor.u32 %v404, 2147483648
      %v422 = vmul.f32 %v406, 1.442695
      %v423 = vpow.pop %v422
      %v424 = vmul.f32 %v407, 1.442695
      %v425 = vpow.pop %v424
      %v426 = vmul.f32 %v408, 1.442695
      %v427 = vpow.pop %v426
      %v428 = vmul.f32 %v409, 1.442695
      %v429 = vpow.pop %v428
      %v430 = vmul.f32 %v410, 1.442695
      %v431 = vpow.pop %v430
      %v432 = vmul.f32 %v411, 1.442695
      %v433 = vpow.pop %v432
      %v434 = vmul.f32 %v412, 1.442695
      %v435 = vpow.pop %v434
      %v436 = vmul.f32 %v413, 1.442695
      %v437 = vpow.pop %v436
      %v438 = vmul.f32 %v414, 1.442695
      %v439 = vpow.pop %v438
      %v440 = vmul.f32 %v415, 1.442695
      %v441 = vpow.pop %v440
      %v442 = vmul.f32 %v416, 1.442695
      %v443 = vpow.pop %v442
      %v444 = vmul.f32 %v417, 1.442695
      %v445 = vpow.pop %v444
      %v446 = vmul.f32 %v418, 1.442695
      %v447 = vpow.pop %v446
      %v448 = vmul.f32 %v419, 1.442695
      %v449 = vpow.pop %v448
      %v450 = vmul.f32 %v420, 1.442695
      %v451 = vpow.pop %v450
      %v452 = vmul.f32 %v421, 1.442695
      %v453 = vpow.pop %v452
      %v454 = vadd.f32 %v423, 1.0
      %v455 = vadd.f32 %v425, 1.0
      %v456 = vadd.f32 %v427, 1.0
      %v457 = vadd.f32 %v429, 1.0
      %v458 = vadd.f32 %v431, 1.0
      %v459 = vadd.f32 %v433, 1.0
      %v460 = vadd.f32 %v435, 1.0
      %v461 = vadd.f32 %v437, 1.0
      %v462 = vadd.f32 %v439, 1.0
      %v463 = vadd.f32 %v441, 1.0
      %v464 = vadd.f32 %v443, 1.0
      %v465 = vadd.f32 %v445, 1.0
      %v466 = vadd.f32 %v447, 1.0
      %v467 = vadd.f32 %v449, 1.0
      %v468 = vadd.f32 %v451, 1.0
      %v469 = vadd.f32 %v453, 1.0
      %v470 = vrcp.pop %v454
      %v471 = vmul.f32 %v454, %v470
      %v472 = vsub.f32 1.0, %v471
      %v473 = vmul.f32 %v470, %v472
      %v474 = vadd.f32 %v470, %v473
      %vm475 = vweird.f32 %v454
      %vm476 = vweird.f32 %v470
      %vm477 = vmor %vm475, %vm476
      %v478 = vsel %vm477, %v470, %v474
      %v479 = vand.u32 2147483647, %v454
      %vm480 = vcmp.eq.f32.partialorder %v479, 8.507059e+37
      %v481 = vand.u32 %v454, 2147483648
      %v482 = vor.u32 1.1754944e-38, %v481
      %v483 = vsel %vm480, %v482, %v478
      %v484 = vmul.f32 1.0, %v483
      %v485 = vrcp.pop %v455
      %v486 = vmul.f32 %v455, %v485
      %v487 = vsub.f32 1.0, %v486
      %v488 = vmul.f32 %v485, %v487
      %v489 = vadd.f32 %v485, %v488
      %vm490 = vweird.f32 %v455
      %vm491 = vweird.f32 %v485
      %vm492 = vmor %vm490, %vm491
      %v493 = vsel %vm492, %v485, %v489
      %v494 = vand.u32 2147483647, %v455
      %vm495 = vcmp.eq.f32.partialorder %v494, 8.507059e+37
      %v496 = vand.u32 %v455, 2147483648
      %v497 = vor.u32 1.1754944e-38, %v496
      %v498 = vsel %vm495, %v497, %v493
      %v499 = vmul.f32 1.0, %v498
      %v500 = vrcp.pop %v456
      %v501 = vmul.f32 %v456, %v500
      %v502 = vsub.f32 1.0, %v501
      %v503 = vmul.f32 %v500, %v502
      %v504 = vadd.f32 %v500, %v503
      %vm505 = vweird.f32 %v456
      %vm506 = vweird.f32 %v500
      %vm507 = vmor %vm505, %vm506
      %v508 = vsel %vm507, %v500, %v504
      %v509 = vand.u32 2147483647, %v456
      %vm510 = vcmp.eq.f32.partialorder %v509, 8.507059e+37
      %v511 = vand.u32 %v456, 2147483648
      %v512 = vor.u32 1.1754944e-38, %v511
      %v513 = vsel %vm510, %v512, %v508
      %v514 = vmul.f32 1.0, %v513
      %v515 = vrcp.pop %v457
      %v516 = vmul.f32 %v457, %v515
      %v517 = vsub.f32 1.0, %v516
      %v518 = vmul.f32 %v515, %v517
      %v519 = vadd.f32 %v515, %v518
      %vm520 = vweird.f32 %v457
      %vm521 = vweird.f32 %v515
      %vm522 = vmor %vm520, %vm521
      %v523 = vsel %vm522, %v515, %v519
      %v524 = vand.u32 2147483647, %v457
      %vm525 = vcmp.eq.f32.partialorder %v524, 8.507059e+37
      %v526 = vand.u32 %v457, 2147483648
      %v527 = vor.u32 1.1754944e-38, %v526
      %v528 = vsel %vm525, %v527, %v523
      %v529 = vmul.f32 1.0, %v528
      %v530 = vrcp.pop %v458
      %v531 = vmul.f32 %v458, %v530
      %v532 = vsub.f32 1.0, %v531
      %v533 = vmul.f32 %v530, %v532
      %v534 = vadd.f32 %v530, %v533
      %vm535 = vweird.f32 %v458
      %vm536 = vweird.f32 %v530
      %vm537 = vmor %vm535, %vm536
      %v538 = vsel %vm537, %v530, %v534
      %v539 = vand.u32 2147483647, %v458
      %vm540 = vcmp.eq.f32.partialorder %v539, 8.507059e+37
      %v541 = vand.u32 %v458, 2147483648
      %v542 = vor.u32 1.1754944e-38, %v541
      %v543 = vsel %vm540, %v542, %v538
      %v544 = vmul.f32 1.0, %v543
      %v545 = vrcp.pop %v459
      %v546 = vmul.f32 %v459, %v545
      %v547 = vsub.f32 1.0, %v546
      %v548 = vmul.f32 %v545, %v547
      %v549 = vadd.f32 %v545, %v548
      %vm550 = vweird.f32 %v459
      %vm551 = vweird.f32 %v545
      %vm552 = vmor %vm550, %vm551
      %v553 = vsel %vm552, %v545, %v549
      %v554 = vand.u32 2147483647, %v459
      %vm555 = vcmp.eq.f32.partialorder %v554, 8.507059e+37
      %v556 = vand.u32 %v459, 2147483648
      %v557 = vor.u32 1.1754944e-38, %v556
      %v558 = vsel %vm555, %v557, %v553
      %v559 = vmul.f32 1.0, %v558
      %v560 = vrcp.pop %v460
      %v561 = vmul.f32 %v460, %v560
      %v562 = vsub.f32 1.0, %v561
      %v563 = vmul.f32 %v560, %v562
      %v564 = vadd.f32 %v560, %v563
      %vm565 = vweird.f32 %v460
      %vm566 = vweird.f32 %v560
      %vm567 = vmor %vm565, %vm566
      %v568 = vsel %vm567, %v560, %v564
      %v569 = vand.u32 2147483647, %v460
      %vm570 = vcmp.eq.f32.partialorder %v569, 8.507059e+37
      %v571 = vand.u32 %v460, 2147483648
      %v572 = vor.u32 1.1754944e-38, %v571
      %v573 = vsel %vm570, %v572, %v568
      %v574 = vmul.f32 1.0, %v573
      %v575 = vrcp.pop %v461
      %v576 = vmul.f32 %v461, %v575
      %v577 = vsub.f32 1.0, %v576
      %v578 = vmul.f32 %v575, %v577
      %v579 = vadd.f32 %v575, %v578
      %vm580 = vweird.f32 %v461
      %vm581 = vweird.f32 %v575
      %vm582 = vmor %vm580, %vm581
      %v583 = vsel %vm582, %v575, %v579
      %v584 = vand.u32 2147483647, %v461
      %vm585 = vcmp.eq.f32.partialorder %v584, 8.507059e+37
      %v586 = vand.u32 %v461, 2147483648
      %v587 = vor.u32 1.1754944e-38, %v586
      %v588 = vsel %vm585, %v587, %v583
      %v589 = vmul.f32 1.0, %v588
      %v590 = vrcp.pop %v462
      %v591 = vmul.f32 %v462, %v590
      %v592 = vsub.f32 1.0, %v591
      %v593 = vmul.f32 %v590, %v592
      %v594 = vadd.f32 %v590, %v593
      %vm595 = vweird.f32 %v462
      %vm596 = vweird.f32 %v590
      %vm597 = vmor %vm595, %vm596
      %v598 = vsel %vm597, %v590, %v594
      %v599 = vand.u32 2147483647, %v462
      %vm600 = vcmp.eq.f32.partialorder %v599, 8.507059e+37
      %v601 = vand.u32 %v462, 2147483648
      %v602 = vor.u32 1.1754944e-38, %v601
      %v603 = vsel %vm600, %v602, %v598
      %v604 = vmul.f32 1.0, %v603
      %v605 = vrcp.pop %v463
      %v606 = vmul.f32 %v463, %v605
      %v607 = vsub.f32 1.0, %v606
      %v608 = vmul.f32 %v605, %v607
      %v609 = vadd.f32 %v605, %v608
      %vm610 = vweird.f32 %v463
      %vm611 = vweird.f32 %v605
      %vm612 = vmor %vm610, %vm611
      %v613 = vsel %vm612, %v605, %v609
      %v614 = vand.u32 2147483647, %v463
      %vm615 = vcmp.eq.f32.partialorder %v614, 8.507059e+37
      %v616 = vand.u32 %v463, 2147483648
      %v617 = vor.u32 1.1754944e-38, %v616
      %v618 = vsel %vm615, %v617, %v613
      %v619 = vmul.f32 1.0, %v618
      %v620 = vrcp.pop %v464
      %v621 = vmul.f32 %v464, %v620
      %v622 = vsub.f32 1.0, %v621
      %v623 = vmul.f32 %v620, %v622
      %v624 = vadd.f32 %v620, %v623
      %vm625 = vweird.f32 %v464
      %vm626 = vweird.f32 %v620
      %vm627 = vmor %vm625, %vm626
      %v628 = vsel %vm627, %v620, %v624
      %v629 = vand.u32 2147483647, %v464
      %vm630 = vcmp.eq.f32.partialorder %v629, 8.507059e+37
      %v631 = vand.u32 %v464, 2147483648
      %v632 = vor.u32 1.1754944e-38, %v631
      %v633 = vsel %vm630, %v632, %v628
      %v634 = vmul.f32 1.0, %v633
      %v635 = vrcp.pop %v465
      %v636 = vmul.f32 %v465, %v635
      %v637 = vsub.f32 1.0, %v636
      %v638 = vmul.f32 %v635, %v637
      %v639 = vadd.f32 %v635, %v638
      %vm640 = vweird.f32 %v465
      %vm641 = vweird.f32 %v635
      %vm642 = vmor %vm640, %vm641
      %v643 = vsel %vm642, %v635, %v639
      %v644 = vand.u32 2147483647, %v465
      %vm645 = vcmp.eq.f32.partialorder %v644, 8.507059e+37
      %v646 = vand.u32 %v465, 2147483648
      %v647 = vor.u32 1.1754944e-38, %v646
      %v648 = vsel %vm645, %v647, %v643
      %v649 = vmul.f32 1.0, %v648
      %v650 = vrcp.pop %v466
      %v651 = vmul.f32 %v466, %v650
      %v652 = vsub.f32 1.0, %v651
      %v653 = vmul.f32 %v650, %v652
      %v654 = vadd.f32 %v650, %v653
      %vm655 = vweird.f32 %v466
      %vm656 = vweird.f32 %v650
      %vm657 = vmor %vm655, %vm656
      %v658 = vsel %vm657, %v650, %v654
      %v659 = vand.u32 2147483647, %v466
      %vm660 = vcmp.eq.f32.partialorder %v659, 8.507059e+37
      %v661 = vand.u32 %v466, 2147483648
      %v662 = vor.u32 1.1754944e-38, %v661
      %v663 = vsel %vm660, %v662, %v658
      %v664 = vmul.f32 1.0, %v663
      %v665 = vrcp.pop %v467
      %v666 = vmul.f32 %v467, %v665
      %v667 = vsub.f32 1.0, %v666
      %v668 = vmul.f32 %v665, %v667
      %v669 = vadd.f32 %v665, %v668
      %vm670 = vweird.f32 %v467
      %vm671 = vweird.f32 %v665
      %vm672 = vmor %vm670, %vm671
      %v673 = vsel %vm672, %v665, %v669
      %v674 = vand.u32 2147483647, %v467
      %vm675 = vcmp.eq.f32.partialorder %v674, 8.507059e+37
      %v676 = vand.u32 %v467, 2147483648
      %v677 = vor.u32 1.1754944e-38, %v676
      %v678 = vsel %vm675, %v677, %v673
      %v679 = vmul.f32 1.0, %v678
      %v680 = vrcp.pop %v468
      %v681 = vmul.f32 %v468, %v680
      %v682 = vsub.f32 1.0, %v681
      %v683 = vmul.f32 %v680, %v682
      %v684 = vadd.f32 %v680, %v683
      %vm685 = vweird.f32 %v468
      %vm686 = vweird.f32 %v680
      %vm687 = vmor %vm685, %vm686
      %v688 = vsel %vm687, %v680, %v684
      %v689 = vand.u32 2147483647, %v468
      %vm690 = vcmp.eq.f32.partialorder %v689, 8.507059e+37
      %v691 = vand.u32 %v468, 2147483648
      %v692 = vor.u32 1.1754944e-38, %v691
      %v693 = vsel %vm690, %v692, %v688
      %v694 = vmul.f32 1.0, %v693
      %v695 = vrcp.pop %v469
      %v696 = vmul.f32 %v469, %v695
      %v697 = vsub.f32 1.0, %v696
      %v698 = vmul.f32 %v695, %v697
      %v699 = vadd.f32 %v695, %v698
      %vm700 = vweird.f32 %v469
      %vm701 = vweird.f32 %v695
      %vm702 = vmor %vm700, %vm701
      %v703 = vsel %vm702, %v695, %v699
      %v704 = vand.u32 2147483647, %v469
      %vm705 = vcmp.eq.f32.partialorder %v704, 8.507059e+37
      %v706 = vand.u32 %v469, 2147483648
      %v707 = vor.u32 1.1754944e-38, %v706
      %v708 = vsel %vm705, %v707, %v703
      %v709 = vmul.f32 1.0, %v708
      %v710 = vmul.f32 %v367, %v484
      %v711 = vmul.f32 %v369, %v499
      %v712 = vmul.f32 %v372, %v514
      %v713 = vmul.f32 %v374, %v529
      %v714 = vmul.f32 %v377, %v544
      %v715 = vmul.f32 %v379, %v559
      %v716 = vmul.f32 %v382, %v574
      %v717 = vmul.f32 %v384, %v589
      %v718 = vmul.f32 %v387, %v604
      %v719 = vmul.f32 %v389, %v619
      %v720 = vmul.f32 %v392, %v634
      %v721 = vmul.f32 %v394, %v649
      %v722 = vmul.f32 %v397, %v664
      %v723 = vmul.f32 %v399, %v679
      %v724 = vmul.f32 %v402, %v694
      %v725 = vmul.f32 %v404, %v709
      %v726 = vpack.c.bf16 %v711, %v710
      %v727 = vpack.c.bf16 %v713, %v712
      %v728 = vpack.c.bf16 %v715, %v714
      %v729 = vpack.c.bf16 %v717, %v716
      %v730 = vpack.c.bf16 %v719, %v718
      %v731 = vpack.c.bf16 %v721, %v720
      %v732 = vpack.c.bf16 %v723, %v722
      %v733 = vpack.c.bf16 %v725, %v724
      %v734 = vld [vmem:[%s3] sm:$0xf]
      %v735 = vld [vmem:[%s3 + $0x4] sm:$0xf]
      %v736 = vld [vmem:[%s3 + $0x8] sm:$0xf]
      %v737 = vld [vmem:[%s3 + $0xc] sm:$0xf]
      %v738 = vld [vmem:[%s3 + $0x10] sm:$0xf]
      %v739 = vld [vmem:[%s3 + $0x14] sm:$0xf]
      %v740 = vld [vmem:[%s3 + $0x18] sm:$0xf]
      %v741 = vld [vmem:[%s3 + $0x1c] sm:$0xf]
      %v742 = vld [vmem:[%s3 + $0x20] sm:$0xf]
      %v743 = vld [vmem:[%s3 + $0x24] sm:$0xf]
      %v744 = vld [vmem:[%s3 + $0x28] sm:$0xf]
      %v745 = vld [vmem:[%s3 + $0x2c] sm:$0xf]
      %v746 = vld [vmem:[%s3 + $0x30] sm:$0xf]
      %v747 = vld [vmem:[%s3 + $0x34] sm:$0xf]
      %v748 = vld [vmem:[%s3 + $0x38] sm:$0xf]
      %v749 = vld [vmem:[%s3 + $0x3c] sm:$0xf]
      %v750 = vld [vmem:[%s4] sm:$0x1]
      %v752 = vperm.slane %v750, 0
      %v770 = vunpack.c.l.b16 %v734
      %v771 = vunpack.c.l.b16 %v735
      %v772 = vunpack.c.l.b16 %v736
      %v773 = vunpack.c.l.b16 %v737
      %v774 = vunpack.c.l.b16 %v738
      %v775 = vunpack.c.l.b16 %v739
      %v776 = vunpack.c.l.b16 %v740
      %v777 = vunpack.c.l.b16 %v741
      %v778 = vunpack.c.l.b16 %v742
      %v779 = vunpack.c.l.b16 %v743
      %v780 = vunpack.c.l.b16 %v744
      %v781 = vunpack.c.l.b16 %v745
      %v782 = vunpack.c.l.b16 %v746
      %v783 = vunpack.c.l.b16 %v747
      %v784 = vunpack.c.l.b16 %v748
      %v785 = vunpack.c.l.b16 %v749
      %v786 = vpack.c.b16 %v771, %v770
      %v787 = vpack.c.b16 %v773, %v772
      %v788 = vpack.c.b16 %v775, %v774
      %v789 = vpack.c.b16 %v777, %v776
      %v790 = vpack.c.b16 %v779, %v778
      %v791 = vpack.c.b16 %v781, %v780
      %v792 = vpack.c.b16 %v783, %v782
      %v793 = vpack.c.b16 %v785, %v784
      %802 = vmatpush.bf16.msra.mxu0 %v793
      %803 = vmatpush.bf16.msra.mxu0 %v792
      %804 = vmatpush.bf16.msra.mxu0 %v791
      %805 = vmatpush.bf16.msra.mxu0 %v790
      %806 = vmatpush.bf16.msra.mxu0 %v789
      %807 = vmatpush.bf16.msra.mxu0 %v788
      %808 = vmatpush.bf16.msra.mxu0 %v787
      %809 = vmatpush.bf16.msra.mxu0 %v786
      %810 = vmatmul.bf16.gmra.mxu0 %v726
      %v811 = vpop.f32.mrf.mxu0
      %v812 = vadd.f32 %v752, %v811
      %v813 = vpop.f32.mrf.mxu0
      %v814 = vadd.f32 %v752, %v813
      %815 = vmatmul.bf16.gmra.mxu0 %v727
      %v816 = vpop.f32.mrf.mxu0
      %v817 = vadd.f32 %v752, %v816
      %v818 = vpop.f32.mrf.mxu0
      %v819 = vadd.f32 %v752, %v818
      %820 = vmatmul.bf16.gmra.mxu0 %v728
      %v821 = vpop.f32.mrf.mxu0
      %v822 = vadd.f32 %v752, %v821
      %v823 = vpop.f32.mrf.mxu0
      %v824 = vadd.f32 %v752, %v823
      %825 = vmatmul.bf16.gmra.mxu0 %v729
      %v826 = vpop.f32.mrf.mxu0
      %v827 = vadd.f32 %v752, %v826
      %v828 = vpop.f32.mrf.mxu0
      %v829 = vadd.f32 %v752, %v828
      %830 = vmatmul.bf16.gmra.mxu0 %v730
      %v831 = vpop.f32.mrf.mxu0
      %v832 = vadd.f32 %v752, %v831
      %v833 = vpop.f32.mrf.mxu0
      %v834 = vadd.f32 %v752, %v833
      %835 = vmatmul.bf16.gmra.mxu0 %v731
      %v836 = vpop.f32.mrf.mxu0
      %v837 = vadd.f32 %v752, %v836
      %v838 = vpop.f32.mrf.mxu0
      %v839 = vadd.f32 %v752, %v838
      %840 = vmatmul.bf16.gmra.mxu0 %v732
      %v841 = vpop.f32.mrf.mxu0
      %v842 = vadd.f32 %v752, %v841
      %v843 = vpop.f32.mrf.mxu0
      %v844 = vadd.f32 %v752, %v843
      %845 = vmatmul.bf16.gmra.mxu0 %v733
      %v846 = vpop.f32.mrf.mxu0
      %v847 = vadd.f32 %v752, %v846
      %v848 = vpop.f32.mrf.mxu0
      %v849 = vadd.f32 %v752, %v848
      %850 = vdwg.mxu0
      %v851 = vxor.u32 %v812, 2147483648
      %v852 = vxor.u32 %v814, 2147483648
      %v853 = vxor.u32 %v817, 2147483648
      %v854 = vxor.u32 %v819, 2147483648
      %v855 = vxor.u32 %v822, 2147483648
      %v856 = vxor.u32 %v824, 2147483648
      %v857 = vxor.u32 %v827, 2147483648
      %v858 = vxor.u32 %v829, 2147483648
      %v859 = vxor.u32 %v832, 2147483648
      %v860 = vxor.u32 %v834, 2147483648
      %v861 = vxor.u32 %v837, 2147483648
      %v862 = vxor.u32 %v839, 2147483648
      %v863 = vxor.u32 %v842, 2147483648
      %v864 = vxor.u32 %v844, 2147483648
      %v865 = vxor.u32 %v847, 2147483648
      %v866 = vxor.u32 %v849, 2147483648
      %v867 = vmul.f32 %v851, 1.442695
      %v868 = vpow.pop %v867
      %v869 = vmul.f32 %v852, 1.442695
      %v870 = vpow.pop %v869
      %v871 = vmul.f32 %v853, 1.442695
      %v872 = vpow.pop %v871
      %v873 = vmul.f32 %v854, 1.442695
      %v874 = vpow.pop %v873
      %v875 = vmul.f32 %v855, 1.442695
      %v876 = vpow.pop %v875
      %v877 = vmul.f32 %v856, 1.442695
      %v878 = vpow.pop %v877
      %v879 = vmul.f32 %v857, 1.442695
      %v880 = vpow.pop %v879
      %v881 = vmul.f32 %v858, 1.442695
      %v882 = vpow.pop %v881
      %v883 = vmul.f32 %v859, 1.442695
      %v884 = vpow.pop %v883
      %v885 = vmul.f32 %v860, 1.442695
      %v886 = vpow.pop %v885
      %v887 = vmul.f32 %v861, 1.442695
      %v888 = vpow.pop %v887
      %v889 = vmul.f32 %v862, 1.442695
      %v890 = vpow.pop %v889
      %v891 = vmul.f32 %v863, 1.442695
      %v892 = vpow.pop %v891
      %v893 = vmul.f32 %v864, 1.442695
      %v894 = vpow.pop %v893
      %v895 = vmul.f32 %v865, 1.442695
      %v896 = vpow.pop %v895
      %v897 = vmul.f32 %v866, 1.442695
      %v898 = vpow.pop %v897
      %v899 = vadd.f32 %v868, 1.0
      %v900 = vadd.f32 %v870, 1.0
      %v901 = vadd.f32 %v872, 1.0
      %v902 = vadd.f32 %v874, 1.0
      %v903 = vadd.f32 %v876, 1.0
      %v904 = vadd.f32 %v878, 1.0
      %v905 = vadd.f32 %v880, 1.0
      %v906 = vadd.f32 %v882, 1.0
      %v907 = vadd.f32 %v884, 1.0
      %v908 = vadd.f32 %v886, 1.0
      %v909 = vadd.f32 %v888, 1.0
      %v910 = vadd.f32 %v890, 1.0
      %v911 = vadd.f32 %v892, 1.0
      %v912 = vadd.f32 %v894, 1.0
      %v913 = vadd.f32 %v896, 1.0
      %v914 = vadd.f32 %v898, 1.0
      %v915 = vrcp.pop %v899
      %v916 = vmul.f32 %v899, %v915
      %v917 = vsub.f32 1.0, %v916
      %v918 = vmul.f32 %v915, %v917
      %v919 = vadd.f32 %v915, %v918
      %vm920 = vweird.f32 %v899
      %vm921 = vweird.f32 %v915
      %vm922 = vmor %vm920, %vm921
      %v923 = vsel %vm922, %v915, %v919
      %v924 = vand.u32 2147483647, %v899
      %vm925 = vcmp.eq.f32.partialorder %v924, 8.507059e+37
      %v926 = vand.u32 %v899, 2147483648
      %v927 = vor.u32 1.1754944e-38, %v926
      %v928 = vsel %vm925, %v927, %v923
      %v929 = vmul.f32 1.0, %v928
      %v930 = vrcp.pop %v900
      %v931 = vmul.f32 %v900, %v930
      %v932 = vsub.f32 1.0, %v931
      %v933 = vmul.f32 %v930, %v932
      %v934 = vadd.f32 %v930, %v933
      %vm935 = vweird.f32 %v900
      %vm936 = vweird.f32 %v930
      %vm937 = vmor %vm935, %vm936
      %v938 = vsel %vm937, %v930, %v934
      %v939 = vand.u32 2147483647, %v900
      %vm940 = vcmp.eq.f32.partialorder %v939, 8.507059e+37
      %v941 = vand.u32 %v900, 2147483648
      %v942 = vor.u32 1.1754944e-38, %v941
      %v943 = vsel %vm940, %v942, %v938
      %v944 = vmul.f32 1.0, %v943
      %v945 = vrcp.pop %v901
      %v946 = vmul.f32 %v901, %v945
      %v947 = vsub.f32 1.0, %v946
      %v948 = vmul.f32 %v945, %v947
      %v949 = vadd.f32 %v945, %v948
      %vm950 = vweird.f32 %v901
      %vm951 = vweird.f32 %v945
      %vm952 = vmor %vm950, %vm951
      %v953 = vsel %vm952, %v945, %v949
      %v954 = vand.u32 2147483647, %v901
      %vm955 = vcmp.eq.f32.partialorder %v954, 8.507059e+37
      %v956 = vand.u32 %v901, 2147483648
      %v957 = vor.u32 1.1754944e-38, %v956
      %v958 = vsel %vm955, %v957, %v953
      %v959 = vmul.f32 1.0, %v958
      %v960 = vrcp.pop %v902
      %v961 = vmul.f32 %v902, %v960
      %v962 = vsub.f32 1.0, %v961
      %v963 = vmul.f32 %v960, %v962
      %v964 = vadd.f32 %v960, %v963
      %vm965 = vweird.f32 %v902
      %vm966 = vweird.f32 %v960
      %vm967 = vmor %vm965, %vm966
      %v968 = vsel %vm967, %v960, %v964
      %v969 = vand.u32 2147483647, %v902
      %vm970 = vcmp.eq.f32.partialorder %v969, 8.507059e+37
      %v971 = vand.u32 %v902, 2147483648
      %v972 = vor.u32 1.1754944e-38, %v971
      %v973 = vsel %vm970, %v972, %v968
      %v974 = vmul.f32 1.0, %v973
      %v975 = vrcp.pop %v903
      %v976 = vmul.f32 %v903, %v975
      %v977 = vsub.f32 1.0, %v976
      %v978 = vmul.f32 %v975, %v977
      %v979 = vadd.f32 %v975, %v978
      %vm980 = vweird.f32 %v903
      %vm981 = vweird.f32 %v975
      %vm982 = vmor %vm980, %vm981
      %v983 = vsel %vm982, %v975, %v979
      %v984 = vand.u32 2147483647, %v903
      %vm985 = vcmp.eq.f32.partialorder %v984, 8.507059e+37
      %v986 = vand.u32 %v903, 2147483648
      %v987 = vor.u32 1.1754944e-38, %v986
      %v988 = vsel %vm985, %v987, %v983
      %v989 = vmul.f32 1.0, %v988
      %v990 = vrcp.pop %v904
      %v991 = vmul.f32 %v904, %v990
      %v992 = vsub.f32 1.0, %v991
      %v993 = vmul.f32 %v990, %v992
      %v994 = vadd.f32 %v990, %v993
      %vm995 = vweird.f32 %v904
      %vm996 = vweird.f32 %v990
      %vm997 = vmor %vm995, %vm996
      %v998 = vsel %vm997, %v990, %v994
      %v999 = vand.u32 2147483647, %v904
      %vm1000 = vcmp.eq.f32.partialorder %v999, 8.507059e+37
      %v1001 = vand.u32 %v904, 2147483648
      %v1002 = vor.u32 1.1754944e-38, %v1001
      %v1003 = vsel %vm1000, %v1002, %v998
      %v1004 = vmul.f32 1.0, %v1003
      %v1005 = vrcp.pop %v905
      %v1006 = vmul.f32 %v905, %v1005
      %v1007 = vsub.f32 1.0, %v1006
      %v1008 = vmul.f32 %v1005, %v1007
      %v1009 = vadd.f32 %v1005, %v1008
      %vm1010 = vweird.f32 %v905
      %vm1011 = vweird.f32 %v1005
      %vm1012 = vmor %vm1010, %vm1011
      %v1013 = vsel %vm1012, %v1005, %v1009
      %v1014 = vand.u32 2147483647, %v905
      %vm1015 = vcmp.eq.f32.partialorder %v1014, 8.507059e+37
      %v1016 = vand.u32 %v905, 2147483648
      %v1017 = vor.u32 1.1754944e-38, %v1016
      %v1018 = vsel %vm1015, %v1017, %v1013
      %v1019 = vmul.f32 1.0, %v1018
      %v1020 = vrcp.pop %v906
      %v1021 = vmul.f32 %v906, %v1020
      %v1022 = vsub.f32 1.0, %v1021
      %v1023 = vmul.f32 %v1020, %v1022
      %v1024 = vadd.f32 %v1020, %v1023
      %vm1025 = vweird.f32 %v906
      %vm1026 = vweird.f32 %v1020
      %vm1027 = vmor %vm1025, %vm1026
      %v1028 = vsel %vm1027, %v1020, %v1024
      %v1029 = vand.u32 2147483647, %v906
      %vm1030 = vcmp.eq.f32.partialorder %v1029, 8.507059e+37
      %v1031 = vand.u32 %v906, 2147483648
      %v1032 = vor.u32 1.1754944e-38, %v1031
      %v1033 = vsel %vm1030, %v1032, %v1028
      %v1034 = vmul.f32 1.0, %v1033
      %v1035 = vrcp.pop %v907
      %v1036 = vmul.f32 %v907, %v1035
      %v1037 = vsub.f32 1.0, %v1036
      %v1038 = vmul.f32 %v1035, %v1037
      %v1039 = vadd.f32 %v1035, %v1038
      %vm1040 = vweird.f32 %v907
      %vm1041 = vweird.f32 %v1035
      %vm1042 = vmor %vm1040, %vm1041
      %v1043 = vsel %vm1042, %v1035, %v1039
      %v1044 = vand.u32 2147483647, %v907
      %vm1045 = vcmp.eq.f32.partialorder %v1044, 8.507059e+37
      %v1046 = vand.u32 %v907, 2147483648
      %v1047 = vor.u32 1.1754944e-38, %v1046
      %v1048 = vsel %vm1045, %v1047, %v1043
      %v1049 = vmul.f32 1.0, %v1048
      %v1050 = vrcp.pop %v908
      %v1051 = vmul.f32 %v908, %v1050
      %v1052 = vsub.f32 1.0, %v1051
      %v1053 = vmul.f32 %v1050, %v1052
      %v1054 = vadd.f32 %v1050, %v1053
      %vm1055 = vweird.f32 %v908
      %vm1056 = vweird.f32 %v1050
      %vm1057 = vmor %vm1055, %vm1056
      %v1058 = vsel %vm1057, %v1050, %v1054
      %v1059 = vand.u32 2147483647, %v908
      %vm1060 = vcmp.eq.f32.partialorder %v1059, 8.507059e+37
      %v1061 = vand.u32 %v908, 2147483648
      %v1062 = vor.u32 1.1754944e-38, %v1061
      %v1063 = vsel %vm1060, %v1062, %v1058
      %v1064 = vmul.f32 1.0, %v1063
      %v1065 = vrcp.pop %v909
      %v1066 = vmul.f32 %v909, %v1065
      %v1067 = vsub.f32 1.0, %v1066
      %v1068 = vmul.f32 %v1065, %v1067
      %v1069 = vadd.f32 %v1065, %v1068
      %vm1070 = vweird.f32 %v909
      %vm1071 = vweird.f32 %v1065
      %vm1072 = vmor %vm1070, %vm1071
      %v1073 = vsel %vm1072, %v1065, %v1069
      %v1074 = vand.u32 2147483647, %v909
      %vm1075 = vcmp.eq.f32.partialorder %v1074, 8.507059e+37
      %v1076 = vand.u32 %v909, 2147483648
      %v1077 = vor.u32 1.1754944e-38, %v1076
      %v1078 = vsel %vm1075, %v1077, %v1073
      %v1079 = vmul.f32 1.0, %v1078
      %v1080 = vrcp.pop %v910
      %v1081 = vmul.f32 %v910, %v1080
      %v1082 = vsub.f32 1.0, %v1081
      %v1083 = vmul.f32 %v1080, %v1082
      %v1084 = vadd.f32 %v1080, %v1083
      %vm1085 = vweird.f32 %v910
      %vm1086 = vweird.f32 %v1080
      %vm1087 = vmor %vm1085, %vm1086
      %v1088 = vsel %vm1087, %v1080, %v1084
      %v1089 = vand.u32 2147483647, %v910
      %vm1090 = vcmp.eq.f32.partialorder %v1089, 8.507059e+37
      %v1091 = vand.u32 %v910, 2147483648
      %v1092 = vor.u32 1.1754944e-38, %v1091
      %v1093 = vsel %vm1090, %v1092, %v1088
      %v1094 = vmul.f32 1.0, %v1093
      %v1095 = vrcp.pop %v911
      %v1096 = vmul.f32 %v911, %v1095
      %v1097 = vsub.f32 1.0, %v1096
      %v1098 = vmul.f32 %v1095, %v1097
      %v1099 = vadd.f32 %v1095, %v1098
      %vm1100 = vweird.f32 %v911
      %vm1101 = vweird.f32 %v1095
      %vm1102 = vmor %vm1100, %vm1101
      %v1103 = vsel %vm1102, %v1095, %v1099
      %v1104 = vand.u32 2147483647, %v911
      %vm1105 = vcmp.eq.f32.partialorder %v1104, 8.507059e+37
      %v1106 = vand.u32 %v911, 2147483648
      %v1107 = vor.u32 1.1754944e-38, %v1106
      %v1108 = vsel %vm1105, %v1107, %v1103
      %v1109 = vmul.f32 1.0, %v1108
      %v1110 = vrcp.pop %v912
      %v1111 = vmul.f32 %v912, %v1110
      %v1112 = vsub.f32 1.0, %v1111
      %v1113 = vmul.f32 %v1110, %v1112
      %v1114 = vadd.f32 %v1110, %v1113
      %vm1115 = vweird.f32 %v912
      %vm1116 = vweird.f32 %v1110
      %vm1117 = vmor %vm1115, %vm1116
      %v1118 = vsel %vm1117, %v1110, %v1114
      %v1119 = vand.u32 2147483647, %v912
      %vm1120 = vcmp.eq.f32.partialorder %v1119, 8.507059e+37
      %v1121 = vand.u32 %v912, 2147483648
      %v1122 = vor.u32 1.1754944e-38, %v1121
      %v1123 = vsel %vm1120, %v1122, %v1118
      %v1124 = vmul.f32 1.0, %v1123
      %v1125 = vrcp.pop %v913
      %v1126 = vmul.f32 %v913, %v1125
      %v1127 = vsub.f32 1.0, %v1126
      %v1128 = vmul.f32 %v1125, %v1127
      %v1129 = vadd.f32 %v1125, %v1128
      %vm1130 = vweird.f32 %v913
      %vm1131 = vweird.f32 %v1125
      %vm1132 = vmor %vm1130, %vm1131
      %v1133 = vsel %vm1132, %v1125, %v1129
      %v1134 = vand.u32 2147483647, %v913
      %vm1135 = vcmp.eq.f32.partialorder %v1134, 8.507059e+37
      %v1136 = vand.u32 %v913, 2147483648
      %v1137 = vor.u32 1.1754944e-38, %v1136
      %v1138 = vsel %vm1135, %v1137, %v1133
      %v1139 = vmul.f32 1.0, %v1138
      %v1140 = vrcp.pop %v914
      %v1141 = vmul.f32 %v914, %v1140
      %v1142 = vsub.f32 1.0, %v1141
      %v1143 = vmul.f32 %v1140, %v1142
      %v1144 = vadd.f32 %v1140, %v1143
      %vm1145 = vweird.f32 %v914
      %vm1146 = vweird.f32 %v1140
      %vm1147 = vmor %vm1145, %vm1146
      %v1148 = vsel %vm1147, %v1140, %v1144
      %v1149 = vand.u32 2147483647, %v914
      %vm1150 = vcmp.eq.f32.partialorder %v1149, 8.507059e+37
      %v1151 = vand.u32 %v914, 2147483648
      %v1152 = vor.u32 1.1754944e-38, %v1151
      %v1153 = vsel %vm1150, %v1152, %v1148
      %v1154 = vmul.f32 1.0, %v1153
      %s1155 = smul.u32 %s17, 128
      %s1156 = scvt.s32.f32 %s1155
      %v1157 = vlaneseq
      %v1158 = vshrl.u32 %v1157, 7
      %v1159 = vadd.s32 %v1158, 8
      %v1160 = vadd.s32 %v1158, 16
      %v1161 = vadd.s32 %v1158, 24
      %v1162 = vadd.s32 %v1158, 32
      %v1163 = vadd.s32 %v1158, 40
      %v1164 = vadd.s32 %v1158, 48
      %v1165 = vadd.s32 %v1158, 56
      %v1166 = vadd.s32 %v1158, 64
      %v1167 = vadd.s32 %v1158, 72
      %v1168 = vadd.s32 %v1158, 80
      %v1169 = vadd.s32 %v1158, 88
      %v1170 = vadd.s32 %v1158, 96
      %v1171 = vadd.s32 %v1158, 104
      %v1172 = vadd.s32 %v1158, 112
      %v1173 = vadd.s32 %v1158, 120
      %v1174 = vcvt.s32.f32 %v1158
      %v1175 = vcvt.s32.f32 %v1159
      %v1176 = vcvt.s32.f32 %v1160
      %v1177 = vcvt.s32.f32 %v1161
      %v1178 = vcvt.s32.f32 %v1162
      %v1179 = vcvt.s32.f32 %v1163
      %v1180 = vcvt.s32.f32 %v1164
      %v1181 = vcvt.s32.f32 %v1165
      %v1182 = vcvt.s32.f32 %v1166
      %v1183 = vcvt.s32.f32 %v1167
      %v1184 = vcvt.s32.f32 %v1168
      %v1185 = vcvt.s32.f32 %v1169
      %v1186 = vcvt.s32.f32 %v1170
      %v1187 = vcvt.s32.f32 %v1171
      %v1188 = vcvt.s32.f32 %v1172
      %v1189 = vcvt.s32.f32 %v1173
      %v1190 = vstv %s1156
      %v1191 = vadd.f32 %v1174, %v1190
      %v1192 = vadd.f32 %v1175, %v1190
      %v1193 = vadd.f32 %v1176, %v1190
      %v1194 = vadd.f32 %v1177, %v1190
      %v1195 = vadd.f32 %v1178, %v1190
      %v1196 = vadd.f32 %v1179, %v1190
      %v1197 = vadd.f32 %v1180, %v1190
      %v1198 = vadd.f32 %v1181, %v1190
      %v1199 = vadd.f32 %v1182, %v1190
      %v1200 = vadd.f32 %v1183, %v1190
      %v1201 = vadd.f32 %v1184, %v1190
      %v1202 = vadd.f32 %v1185, %v1190
      %v1203 = vadd.f32 %v1186, %v1190
      %v1204 = vadd.f32 %v1187, %v1190
      %v1205 = vadd.f32 %v1188, %v1190
      %v1206 = vadd.f32 %v1189, %v1190
      %v1207 = vadd.f32 %v1191, 0.5
      %v1208 = vadd.f32 %v1192, 0.5
      %v1209 = vadd.f32 %v1193, 0.5
      %v1210 = vadd.f32 %v1194, 0.5
      %v1211 = vadd.f32 %v1195, 0.5
      %v1212 = vadd.f32 %v1196, 0.5
      %v1213 = vadd.f32 %v1197, 0.5
      %v1214 = vadd.f32 %v1198, 0.5
      %v1215 = vadd.f32 %v1199, 0.5
      %v1216 = vadd.f32 %v1200, 0.5
      %v1217 = vadd.f32 %v1201, 0.5
      %v1218 = vadd.f32 %v1202, 0.5
      %v1219 = vadd.f32 %v1203, 0.5
      %v1220 = vadd.f32 %v1204, 0.5
      %v1221 = vadd.f32 %v1205, 0.5
      %v1222 = vadd.f32 %v1206, 0.5
      %v1223 = vrcp.pop 256.0
      %v1224 = vmul.f32 256.0, %v1223
      %v1225 = vsub.f32 1.0, %v1224
      %v1226 = vmul.f32 %v1223, %v1225
      %v1227 = vadd.f32 %v1223, %v1226
      %vm1228 = vweird.f32 %v1223
      %v1229 = vsel %vm1228, %v1223, %v1227
      %v1230 = vmul.f32 %v1207, %v1229
      %v1231 = vmul.f32 %v1208, %v1229
      %v1232 = vmul.f32 %v1209, %v1229
      %v1233 = vmul.f32 %v1210, %v1229
      %v1234 = vmul.f32 %v1211, %v1229
      %v1235 = vmul.f32 %v1212, %v1229
      %v1236 = vmul.f32 %v1213, %v1229
      %v1237 = vmul.f32 %v1214, %v1229
      %v1238 = vmul.f32 %v1215, %v1229
      %v1239 = vmul.f32 %v1216, %v1229
      %v1240 = vmul.f32 %v1217, %v1229
      %v1241 = vmul.f32 %v1218, %v1229
      %v1242 = vmul.f32 %v1219, %v1229
      %v1243 = vmul.f32 %v1220, %v1229
      %v1244 = vmul.f32 %v1221, %v1229
      %v1245 = vmul.f32 %v1222, %v1229
      %v1246 = vfloor.f32 %v1230
      %v1247 = vfloor.f32 %v1231
      %v1248 = vfloor.f32 %v1232
      %v1249 = vfloor.f32 %v1233
      %v1250 = vfloor.f32 %v1234
      %v1251 = vfloor.f32 %v1235
      %v1252 = vfloor.f32 %v1236
      %v1253 = vfloor.f32 %v1237
      %v1254 = vfloor.f32 %v1238
      %v1255 = vfloor.f32 %v1239
      %v1256 = vfloor.f32 %v1240
      %v1257 = vfloor.f32 %v1241
      %v1258 = vfloor.f32 %v1242
      %v1259 = vfloor.f32 %v1243
      %v1260 = vfloor.f32 %v1244
      %v1261 = vfloor.f32 %v1245
      %v1262 = vmul.f32 %v1246, 256.0
      %v1263 = vmul.f32 %v1247, 256.0
      %v1264 = vmul.f32 %v1248, 256.0
      %v1265 = vmul.f32 %v1249, 256.0
      %v1266 = vmul.f32 %v1250, 256.0
      %v1267 = vmul.f32 %v1251, 256.0
      %v1268 = vmul.f32 %v1252, 256.0
      %v1269 = vmul.f32 %v1253, 256.0
      %v1270 = vmul.f32 %v1254, 256.0
      %v1271 = vmul.f32 %v1255, 256.0
      %v1272 = vmul.f32 %v1256, 256.0
      %v1273 = vmul.f32 %v1257, 256.0
      %v1274 = vmul.f32 %v1258, 256.0
      %v1275 = vmul.f32 %v1259, 256.0
      %v1276 = vmul.f32 %v1260, 256.0
      %v1277 = vmul.f32 %v1261, 256.0
      %v1278 = vsub.f32 %v1191, %v1262
      %v1279 = vsub.f32 %v1192, %v1263
      %v1280 = vsub.f32 %v1193, %v1264
      %v1281 = vsub.f32 %v1194, %v1265
      %v1282 = vsub.f32 %v1195, %v1266
      %v1283 = vsub.f32 %v1196, %v1267
      %v1284 = vsub.f32 %v1197, %v1268
      %v1285 = vsub.f32 %v1198, %v1269
      %v1286 = vsub.f32 %v1199, %v1270
      %v1287 = vsub.f32 %v1200, %v1271
      %v1288 = vsub.f32 %v1201, %v1272
      %v1289 = vsub.f32 %v1202, %v1273
      %v1290 = vsub.f32 %v1203, %v1274
      %v1291 = vsub.f32 %v1204, %v1275
      %v1292 = vsub.f32 %v1205, %v1276
      %v1293 = vsub.f32 %v1206, %v1277
      %v1294 = vadd.f32 %v1278, 0.5
      %v1295 = vadd.f32 %v1279, 0.5
      %v1296 = vadd.f32 %v1280, 0.5
      %v1297 = vadd.f32 %v1281, 0.5
      %v1298 = vadd.f32 %v1282, 0.5
      %v1299 = vadd.f32 %v1283, 0.5
      %v1300 = vadd.f32 %v1284, 0.5
      %v1301 = vadd.f32 %v1285, 0.5
      %v1302 = vadd.f32 %v1286, 0.5
      %v1303 = vadd.f32 %v1287, 0.5
      %v1304 = vadd.f32 %v1288, 0.5
      %v1305 = vadd.f32 %v1289, 0.5
      %v1306 = vadd.f32 %v1290, 0.5
      %v1307 = vadd.f32 %v1291, 0.5
      %v1308 = vadd.f32 %v1292, 0.5
      %v1309 = vadd.f32 %v1293, 0.5
      %v1310 = vrcp.pop 16.0
      %v1311 = vmul.f32 16.0, %v1310
      %v1312 = vsub.f32 1.0, %v1311
      %v1313 = vmul.f32 %v1310, %v1312
      %v1314 = vadd.f32 %v1310, %v1313
      %vm1315 = vweird.f32 %v1310
      %v1316 = vsel %vm1315, %v1310, %v1314
      %v1317 = vmul.f32 %v1294, %v1316
      %v1318 = vmul.f32 %v1295, %v1316
      %v1319 = vmul.f32 %v1296, %v1316
      %v1320 = vmul.f32 %v1297, %v1316
      %v1321 = vmul.f32 %v1298, %v1316
      %v1322 = vmul.f32 %v1299, %v1316
      %v1323 = vmul.f32 %v1300, %v1316
      %v1324 = vmul.f32 %v1301, %v1316
      %v1325 = vmul.f32 %v1302, %v1316
      %v1326 = vmul.f32 %v1303, %v1316
      %v1327 = vmul.f32 %v1304, %v1316
      %v1328 = vmul.f32 %v1305, %v1316
      %v1329 = vmul.f32 %v1306, %v1316
      %v1330 = vmul.f32 %v1307, %v1316
      %v1331 = vmul.f32 %v1308, %v1316
      %v1332 = vmul.f32 %v1309, %v1316
      %v1333 = vfloor.f32 %v1317
      %v1334 = vfloor.f32 %v1318
      %v1335 = vfloor.f32 %v1319
      %v1336 = vfloor.f32 %v1320
      %v1337 = vfloor.f32 %v1321
      %v1338 = vfloor.f32 %v1322
      %v1339 = vfloor.f32 %v1323
      %v1340 = vfloor.f32 %v1324
      %v1341 = vfloor.f32 %v1325
      %v1342 = vfloor.f32 %v1326
      %v1343 = vfloor.f32 %v1327
      %v1344 = vfloor.f32 %v1328
      %v1345 = vfloor.f32 %v1329
      %v1346 = vfloor.f32 %v1330
      %v1347 = vfloor.f32 %v1331
      %v1348 = vfloor.f32 %v1332
      %v1349 = vmul.f32 %v1333, 16.0
      %v1350 = vmul.f32 %v1334, 16.0
      %v1351 = vmul.f32 %v1335, 16.0
      %v1352 = vmul.f32 %v1336, 16.0
      %v1353 = vmul.f32 %v1337, 16.0
      %v1354 = vmul.f32 %v1338, 16.0
      %v1355 = vmul.f32 %v1339, 16.0
      %v1356 = vmul.f32 %v1340, 16.0
      %v1357 = vmul.f32 %v1341, 16.0
      %v1358 = vmul.f32 %v1342, 16.0
      %v1359 = vmul.f32 %v1343, 16.0
      %v1360 = vmul.f32 %v1344, 16.0
      %v1361 = vmul.f32 %v1345, 16.0
      %v1362 = vmul.f32 %v1346, 16.0
      %v1363 = vmul.f32 %v1347, 16.0
      %v1364 = vmul.f32 %v1348, 16.0
      %v1365 = vsub.f32 %v1278, %v1349
      %v1366 = vsub.f32 %v1279, %v1350
      %v1367 = vsub.f32 %v1280, %v1351
      %v1368 = vsub.f32 %v1281, %v1352
      %v1369 = vsub.f32 %v1282, %v1353
      %v1370 = vsub.f32 %v1283, %v1354
      %v1371 = vsub.f32 %v1284, %v1355
      %v1372 = vsub.f32 %v1285, %v1356
      %v1373 = vsub.f32 %v1286, %v1357
      %v1374 = vsub.f32 %v1287, %v1358
      %v1375 = vsub.f32 %v1288, %v1359
      %v1376 = vsub.f32 %v1289, %v1360
      %v1377 = vsub.f32 %v1290, %v1361
      %v1378 = vsub.f32 %v1291, %v1362
      %v1379 = vsub.f32 %v1292, %v1363
      %v1380 = vsub.f32 %v1293, %v1364
      %v1381 = vld [vmem:[%s5] sm:$0xf]
      %v1382 = vperm.slane %v1381, 0
      %v1383 = vmul.f32 %v1365, %v1382
      %v1384 = vmul.f32 %v1366, %v1382
      %v1385 = vmul.f32 %v1367, %v1382
      %v1386 = vmul.f32 %v1368, %v1382
      %v1387 = vmul.f32 %v1369, %v1382
      %v1388 = vmul.f32 %v1370, %v1382
      %v1389 = vmul.f32 %v1371, %v1382
      %v1390 = vmul.f32 %v1372, %v1382
      %v1391 = vmul.f32 %v1373, %v1382
      %v1392 = vmul.f32 %v1374, %v1382
      %v1393 = vmul.f32 %v1375, %v1382
      %v1394 = vmul.f32 %v1376, %v1382
      %v1395 = vmul.f32 %v1377, %v1382
      %v1396 = vmul.f32 %v1378, %v1382
      %v1397 = vmul.f32 %v1379, %v1382
      %v1398 = vmul.f32 %v1380, %v1382
      %v1399 = vperm.slane %v1381, 1
      %v1400 = vmul.f32 %v1333, %v1399
      %v1401 = vmul.f32 %v1334, %v1399
      %v1402 = vmul.f32 %v1335, %v1399
      %v1403 = vmul.f32 %v1336, %v1399
      %v1404 = vmul.f32 %v1337, %v1399
      %v1405 = vmul.f32 %v1338, %v1399
      %v1406 = vmul.f32 %v1339, %v1399
      %v1407 = vmul.f32 %v1340, %v1399
      %v1408 = vmul.f32 %v1341, %v1399
      %v1409 = vmul.f32 %v1342, %v1399
      %v1410 = vmul.f32 %v1343, %v1399
      %v1411 = vmul.f32 %v1344, %v1399
      %v1412 = vmul.f32 %v1345, %v1399
      %v1413 = vmul.f32 %v1346, %v1399
      %v1414 = vmul.f32 %v1347, %v1399
      %v1415 = vmul.f32 %v1348, %v1399
      %v1416 = vadd.f32 %v1383, %v1400
      %v1417 = vadd.f32 %v1384, %v1401
      %v1418 = vadd.f32 %v1385, %v1402
      %v1419 = vadd.f32 %v1386, %v1403
      %v1420 = vadd.f32 %v1387, %v1404
      %v1421 = vadd.f32 %v1388, %v1405
      %v1422 = vadd.f32 %v1389, %v1406
      %v1423 = vadd.f32 %v1390, %v1407
      %v1424 = vadd.f32 %v1391, %v1408
      %v1425 = vadd.f32 %v1392, %v1409
      %v1426 = vadd.f32 %v1393, %v1410
      %v1427 = vadd.f32 %v1394, %v1411
      %v1428 = vadd.f32 %v1395, %v1412
      %v1429 = vadd.f32 %v1396, %v1413
      %v1430 = vadd.f32 %v1397, %v1414
      %v1431 = vadd.f32 %v1398, %v1415
      %v1432 = vmul.f32 %v929, 2.0
      %v1433 = vmul.f32 %v944, 2.0
      %v1434 = vmul.f32 %v959, 2.0
      %v1435 = vmul.f32 %v974, 2.0
      %v1436 = vmul.f32 %v989, 2.0
      %v1437 = vmul.f32 %v1004, 2.0
      %v1438 = vmul.f32 %v1019, 2.0
      %v1439 = vmul.f32 %v1034, 2.0
      %v1440 = vmul.f32 %v1049, 2.0
      %v1441 = vmul.f32 %v1064, 2.0
      %v1442 = vmul.f32 %v1079, 2.0
      %v1443 = vmul.f32 %v1094, 2.0
      %v1444 = vmul.f32 %v1109, 2.0
      %v1445 = vmul.f32 %v1124, 2.0
      %v1446 = vmul.f32 %v1139, 2.0
      %v1447 = vmul.f32 %v1154, 2.0
      %v1448 = vsub.f32 %v1432, 0.5
      %v1449 = vsub.f32 %v1433, 0.5
      %v1450 = vsub.f32 %v1434, 0.5
      %v1451 = vsub.f32 %v1435, 0.5
      %v1452 = vsub.f32 %v1436, 0.5
      %v1453 = vsub.f32 %v1437, 0.5
      %v1454 = vsub.f32 %v1438, 0.5
      %v1455 = vsub.f32 %v1439, 0.5
      %v1456 = vsub.f32 %v1440, 0.5
      %v1457 = vsub.f32 %v1441, 0.5
      %v1458 = vsub.f32 %v1442, 0.5
      %v1459 = vsub.f32 %v1443, 0.5
      %v1460 = vsub.f32 %v1444, 0.5
      %v1461 = vsub.f32 %v1445, 0.5
      %v1462 = vsub.f32 %v1446, 0.5
      %v1463 = vsub.f32 %v1447, 0.5
      %v1464 = vadd.f32 %v1448, %v1416
      %v1465 = vadd.f32 %v1449, %v1417
      %v1466 = vadd.f32 %v1450, %v1418
      %v1467 = vadd.f32 %v1451, %v1419
      %v1468 = vadd.f32 %v1452, %v1420
      %v1469 = vadd.f32 %v1453, %v1421
      %v1470 = vadd.f32 %v1454, %v1422
      %v1471 = vadd.f32 %v1455, %v1423
      %v1472 = vadd.f32 %v1456, %v1424
      %v1473 = vadd.f32 %v1457, %v1425
      %v1474 = vadd.f32 %v1458, %v1426
      %v1475 = vadd.f32 %v1459, %v1427
      %v1476 = vadd.f32 %v1460, %v1428
      %v1477 = vadd.f32 %v1461, %v1429
      %v1478 = vadd.f32 %v1462, %v1430
      %v1479 = vadd.f32 %v1463, %v1431
      %v1480 = vmul.f32 %v1432, %v1432
      %v1481 = vmul.f32 %v1433, %v1433
      %v1482 = vmul.f32 %v1434, %v1434
      %v1483 = vmul.f32 %v1435, %v1435
      %v1484 = vmul.f32 %v1436, %v1436
      %v1485 = vmul.f32 %v1437, %v1437
      %v1486 = vmul.f32 %v1438, %v1438
      %v1487 = vmul.f32 %v1439, %v1439
      %v1488 = vmul.f32 %v1440, %v1440
      %v1489 = vmul.f32 %v1441, %v1441
      %v1490 = vmul.f32 %v1442, %v1442
      %v1491 = vmul.f32 %v1443, %v1443
      %v1492 = vmul.f32 %v1444, %v1444
      %v1493 = vmul.f32 %v1445, %v1445
      %v1494 = vmul.f32 %v1446, %v1446
      %v1495 = vmul.f32 %v1447, %v1447
      %v1496 = vperm.slane %v1381, 3
      %v1497 = vmul.f32 %v1480, %v1496
      %v1498 = vmul.f32 %v1481, %v1496
      %v1499 = vmul.f32 %v1482, %v1496
      %v1500 = vmul.f32 %v1483, %v1496
      %v1501 = vmul.f32 %v1484, %v1496
      %v1502 = vmul.f32 %v1485, %v1496
      %v1503 = vmul.f32 %v1486, %v1496
      %v1504 = vmul.f32 %v1487, %v1496
      %v1505 = vmul.f32 %v1488, %v1496
      %v1506 = vmul.f32 %v1489, %v1496
      %v1507 = vmul.f32 %v1490, %v1496
      %v1508 = vmul.f32 %v1491, %v1496
      %v1509 = vmul.f32 %v1492, %v1496
      %v1510 = vmul.f32 %v1493, %v1496
      %v1511 = vmul.f32 %v1494, %v1496
      %v1512 = vmul.f32 %v1495, %v1496
      %v1514 = vrot.slane %v1381, 1
      %v1516 = vadd.f32 %v1381, %v1514
      %vm1517 = vcmp.ne.f32.partialorder %v1516, 0.0
      %vm1518 = vcmp.ne.f32.partialorder %v1381, 0.0
      %v1519 = vsel %vm1518, 1, 0
      %v1520 = vperm.slane %v1519, 2
      %vm1521 = vcmp.eq.s32.totalorder %v1520, 1
      %v1522 = vsel %vm1521, %v1497, %v929
      %v1523 = vsel %vm1521, %v1498, %v944
      %v1524 = vsel %vm1521, %v1499, %v959
      %v1525 = vsel %vm1521, %v1500, %v974
      %v1526 = vsel %vm1521, %v1501, %v989
      %v1527 = vsel %vm1521, %v1502, %v1004
      %v1528 = vsel %vm1521, %v1503, %v1019
      %v1529 = vsel %vm1521, %v1504, %v1034
      %v1530 = vsel %vm1521, %v1505, %v1049
      %v1531 = vsel %vm1521, %v1506, %v1064
      %v1532 = vsel %vm1521, %v1507, %v1079
      %v1533 = vsel %vm1521, %v1508, %v1094
      %v1534 = vsel %vm1521, %v1509, %v1109
      %v1535 = vsel %vm1521, %v1510, %v1124
      %v1536 = vsel %vm1521, %v1511, %v1139
      %v1537 = vsel %vm1521, %v1512, %v1154
      %v1538 = vsel %vm1517, 1, 0
      %v1539 = vperm.slane %v1538, 0
      %vm1540 = vcmp.eq.s32.totalorder %v1539, 1
      %v1541 = vsel %vm1540, %v1464, %v1522
      %v1542 = vsel %vm1540, %v1465, %v1523
      %v1543 = vsel %vm1540, %v1466, %v1524
      %v1544 = vsel %vm1540, %v1467, %v1525
      %v1545 = vsel %vm1540, %v1468, %v1526
      %v1546 = vsel %vm1540, %v1469, %v1527
      %v1547 = vsel %vm1540, %v1470, %v1528
      %v1548 = vsel %vm1540, %v1471, %v1529
      %v1549 = vsel %vm1540, %v1472, %v1530
      %v1550 = vsel %vm1540, %v1473, %v1531
      %v1551 = vsel %vm1540, %v1474, %v1532
      %v1552 = vsel %vm1540, %v1475, %v1533
      %v1553 = vsel %vm1540, %v1476, %v1534
      %v1554 = vsel %vm1540, %v1477, %v1535
      %v1555 = vsel %vm1540, %v1478, %v1536
      %v1556 = vsel %vm1540, %v1479, %v1537
      %1557 = vst.msk [vmem:[%s253] sm:$0xff] %vm332, %v1541
      %1558 = vst.msk [vmem:[%s253 + $0x8] sm:$0xff] %vm332, %v1542
      %1559 = vst.msk [vmem:[%s253 + $0x10] sm:$0xff] %vm332, %v1543
      %1560 = vst.msk [vmem:[%s253 + $0x18] sm:$0xff] %vm332, %v1544
      %1561 = vst.msk [vmem:[%s253 + $0x20] sm:$0xff] %vm332, %v1545
      %1562 = vst.msk [vmem:[%s253 + $0x28] sm:$0xff] %vm332, %v1546
      %1563 = vst.msk [vmem:[%s253 + $0x30] sm:$0xff] %vm332, %v1547
      %1564 = vst.msk [vmem:[%s253 + $0x38] sm:$0xff] %vm332, %v1548
      %1565 = vst.msk [vmem:[%s253 + $0x40] sm:$0xff] %vm332, %v1549
      %1566 = vst.msk [vmem:[%s253 + $0x48] sm:$0xff] %vm332, %v1550
      %1567 = vst.msk [vmem:[%s253 + $0x50] sm:$0xff] %vm332, %v1551
      %1568 = vst.msk [vmem:[%s253 + $0x58] sm:$0xff] %vm332, %v1552
      %1569 = vst.msk [vmem:[%s253 + $0x60] sm:$0xff] %vm332, %v1553
      %1570 = vst.msk [vmem:[%s253 + $0x68] sm:$0xff] %vm332, %v1554
      %1571 = vst.msk [vmem:[%s253 + $0x70] sm:$0xff] %vm332, %v1555
      %1572 = vst.msk [vmem:[%s253 + $0x78] sm:$0xff] %vm332, %v1556
      %s1573 = smul.u32 16, %s17
      %p1574 = scmp.lt.s32.totalorder %s1573, 31
      %s1575 = scalar_select %p1574, %s1573, 31
      %s1576 = smul.addr %s1575, 8
      %s1577 = scalar_lea.vmem %s6, %s1576
      // Predicated region
      $region45: #{tpu_custom_call.1} parent=43 // pred_check
        %p1578 = pneg %p166
      $region46: #{tpu_custom_call.1} parent=43 // pred_check_branch
        %1580 = sbr.rel (%p1578) target = $region48
      $region47: #{tpu_custom_call.1} parent=43 // pred_region
        %s1581 = smul.u32 16, %s17
      $region48: #{tpu_custom_call.1} parent=43 // pred_fallthru
        _
    $region44: #{tpu_custom_call.1} parent=5 // pred_fallthru
      _
    %p1582 = scmp.le.s32.totalorder 2, %s12
    // Predicated region
    $region49: #{tpu_custom_call.1} parent=5 // pred_check
      %p1583 = pneg %p1582
    $region50: #{tpu_custom_call.1} parent=5 // pred_check_branch
      %1585 = sbr.rel (%p1583) target = $region52
    $region51: #{tpu_custom_call.1} parent=5 // pred_region
      %s1586 = ssub.s32 %s12, 2
      // Predicated region
      $region53: #{tpu_custom_call.1} parent=51 // pred_check
        %p1587 = pneg %p172
      $region54: #{tpu_custom_call.1} parent=51 // pred_check_branch
        %1589 = sbr.rel (%p1587) target = $region56
      $region55: #{tpu_custom_call.1} parent=51 // pred_region
        %s1590 = smul.u32 16, %s18
        %p1591 = scmp.lt.s32.totalorder %s1590, 31
        %s1592 = scalar_select %p1591, %s1590, 31
        %s1593 = smul.addr %s1592, 8
        %s1594 = scalar_lea.vmem %s6, %s1593
      $region56: #{tpu_custom_call.1} parent=51 // pred_fallthru
        _
    $region52: #{tpu_custom_call.1} parent=5 // pred_fallthru
      _
  $region6: #{tpu_custom_call.1} parent=0 // loop_footer
    %s16 = sadd.s32 1, %s12
  $region7: #{tpu_custom_call.1} parent=0 // loop_footer_branch
    %11 = sbr.rel target = $region3
  $region8: #{tpu_custom_call.1} parent=0 // loop_exit
    _

</llo_original>
